<compile_context>
chip_gen: v5e
topology: v5e:2x2
jax: 0.10.0
libtpu: 0.0.40
codegen_flags: <defaults>
</compile_context>

<pallas_src>
import jax
import jax.numpy as jnp
from jax.experimental import pallas as pl
from jax.experimental.pallas import tpu as pltpu

LANE = 128   # feature dims are zero-padded to multiples of the TPU lane width


def _round_up(n, m):
    return ((n + m - 1) // m) * m


def _pad2d(a, rows, cols):
    pr, pc = rows - a.shape[0], cols - a.shape[1]
    if pr or pc:
        a = jnp.pad(a, ((0, pr), (0, pc)))
    return a


def _const_spec(shape):
    """Constant-index BlockSpec for a VMEM-resident operand; single-buffered
    when the installed Pallas supports pipeline_mode=pl.Buffered(1)."""
    if hasattr(pl, "Buffered"):
        try:
            return pl.BlockSpec(shape, lambda i: (0, 0),
                                pipeline_mode=pl.Buffered(1))
        except TypeError:
            pass
    return pl.BlockSpec(shape, lambda i: (0, 0))


def prepare_params(params, input_dim):
    """One-time parameter prep (hoisted out of the per-call path).

    Pads every feature dim up to a multiple of 128 lanes, casts weights to
    bf16 (MXU operands), and packs the six biases into one f32 (8, max_pd)
    array. Zero-padding is exact: padded rows/cols/lanes are 0, so padded
    lanes stay 0 through every ReLU layer.
    """
    dims = [input_dim] + [w.shape[1] for (w, _) in params]
    pdims = [_round_up(d, LANE) for d in dims]

    weights = []
    for li, (w, _) in enumerate(params):
        assert w.shape == (dims[li], dims[li + 1])
        weights.append(_pad2d(w, pdims[li], pdims[li + 1]).astype(jnp.bfloat16))

    max_pd = max(pdims[1:])
    bias_pack = jnp.zeros((8, max_pd), jnp.float32)        # 8 rows: sublane-aligned
    for li, (_, b) in enumerate(params):
        bias_pack = bias_pack.at[li, :dims[li + 1]].set(b.reshape(-1))

    return {"dims": dims, "pdims": pdims,
            "weights": weights, "bias_pack": bias_pack}


def autoencoder_forward(x, prep, *, tb=None):
    """x: (B, input_dim) f32; prep: output of prepare_params (pre-padded bf16
    weights + packed f32 biases)."""
    dims, pdims = prep["dims"], prep["pdims"]
    weights, bias_pack = prep["weights"], prep["bias_pack"]
    out_pdims = pdims[1:]

    B, input_dim = x.shape
    assert input_dim == dims[0]

    if tb is None:
        # Single-TC v5e/v6e: one grid step amortizes the ~0.35us/step overhead.
        # TODO(synk): on v7x (2 TCs/chip) keep Bp // tb >= 2 so both cores get
        # a batch tile; at real autoencoder widths also HBM-tile (pl.ANY +
        # emit_pipeline) the two largest decoder weights and consider fp8
        # weights, since v7x has only 64 MiB VMEM per core.
        tb = min(256, _round_up(B, 8))
    Bp = _round_up(B, tb)

    # Only the activations are padded/cast per call (they change every call).
    xp = _pad2d(x, Bp, pdims[0]).astype(jnp.bfloat16)

    def kernel(x_ref, w1, w2, w3, w4, w5, w6, b_ref, o_ref):
        ws = (w1, w2, w3, w4, w5, w6)
        bias = b_ref[...]                                  # (8, max_pd) f32
        h = x_ref[...]                                     # (tb, d0p) bf16
        z = None
        for li in range(6):
            z = jnp.dot(h, ws[li][...],                    # bf16 x bf16 -> f32 acc
                        preferred_element_type=jnp.float32)
            z = z + bias[li:li + 1, :out_pdims[li]]
            if li < 5:
                h = jnp.maximum(z, 0.0).astype(jnp.bfloat16)
        # Numerically-stable sigmoid (no exp overflow), exact reciprocal.
        e = jnp.exp(-jnp.abs(z))
        inv = 1.0 / (1.0 + e)
        o_ref[...] = jnp.where(z >= 0.0, inv, e * inv).astype(o_ref.dtype)

    grid = (Bp // tb,)

    in_specs = [pl.BlockSpec((tb, pdims[0]), lambda i: (i, 0))]
    for w in weights:
        in_specs.append(_const_spec(w.shape))              # VMEM-resident weights
    in_specs.append(_const_spec(bias_pack.shape))          # packed biases

    out_specs = pl.BlockSpec((tb, pdims[-1]), lambda i: (i, 0))

    # Scheduler / VMEM hints.
    flops = 2 * Bp * sum(pdims[l] * pdims[l + 1] for l in range(6))
    w_bytes = (sum(int(w.size) * w.dtype.itemsize for w in weights)
               + int(bias_pack.size) * bias_pack.dtype.itemsize)
    io_bytes = int(xp.size) * 2 + Bp * pdims[-1] * 4
    cost = pl.CostEstimate(flops=int(flops),
                           transcendentals=int(Bp * pdims[-1]),
                           bytes_accessed=int(w_bytes + io_bytes))

    try:
        vmem_phys = int(pltpu.get_tpu_info().vmem_capacity_bytes)
    except Exception:
        vmem_phys = 64 << 20                               # conservative (v7x per-TC)
    vmem_cap = max(vmem_phys - (8 << 20), 16 << 20)

    act_bytes = tb * max(pdims) * 4
    vmem_need = (w_bytes                                    # single-buffered weights
                 + 8 * act_bytes                            # layer activations
                 + 2 * (tb * pdims[0] * 2 + tb * pdims[-1] * 4)  # dbl-buffered x / out
                 + (4 << 20))                               # compiler scratch headroom
    vmem_limit = int(min(vmem_need, vmem_cap))

    out = pl.pallas_call(
        kernel,
        out_shape=jax.ShapeDtypeStruct((Bp, pdims[-1]), jnp.float32),
        grid=grid,
        in_specs=in_specs,
        out_specs=out_specs,
        compiler_params=pltpu.CompilerParams(
            dimension_semantics=("parallel",),
            vmem_limit_bytes=vmem_limit),
        cost_estimate=cost,
    )(xp, *weights, bias_pack)
    # Padded output lanes hold sigmoid(0)=0.5; they are sliced off here.
    return out[:B, :input_dim]


def init_params(key, input_dim, encoding_dim):
    """Deterministic synthetic init matching the module's layer shapes."""
    dims = [
        (input_dim, encoding_dim * 3),
        (encoding_dim * 3, encoding_dim * 2),
        (encoding_dim * 2, encoding_dim),
        (encoding_dim, input_dim * 2),
        (input_dim * 2, input_dim * 3),
        (input_dim * 3, input_dim),
    ]
    params = []
    for din, dout in dims:
        key, kw, kb = jax.random.split(key, 3)
        bound = 1.0 / jnp.sqrt(jnp.float32(din))   # PyTorch-style uniform bound
        w = jax.random.uniform(kw, (din, dout), jnp.float32, -bound, bound)
        b = jax.random.uniform(kb, (1, dout), jnp.float32, -bound, bound)
        params.append((w, b))
    return params


def reference_forward(x, params, *, emulate_bf16=False):
    """Pure-JAX reference. emulate_bf16=True mirrors the kernel's bf16 matmul
    inputs (f32 accumulation) for a tight numerical comparison."""
    def rd(a):
        return a.astype(jnp.bfloat16).astype(jnp.float32) if emulate_bf16 else a

    h = rd(x)
    for i, (w, b) in enumerate(params):
        h = jnp.dot(h, rd(w), precision=jax.lax.Precision.HIGHEST) + b
        if i < len(params) - 1:
            h = rd(jnp.maximum(h, 0.0))
        else:
            h = jax.nn.sigmoid(h)
    return h


if __name__ == "__main__":
    B, INPUT_DIM, ENCODING_DIM = 256, 32, 16

    key = jax.random.PRNGKey(0)
    key, kx = jax.random.split(key)
    x = jax.random.normal(kx, (B, INPUT_DIM), jnp.float32)
    params = init_params(key, INPUT_DIM, ENCODING_DIM)

    # One-time parameter prep (pad + bf16 cast + bias packing), reused per call.
    prep = prepare_params(params, INPUT_DIM)

    y = autoencoder_forward(x, prep)          # tb auto -> 256 -> grid=(1,)
    y = jax.block_until_ready(y)
    assert y.shape == (B, INPUT_DIM)

    # Tight check vs a reference that emulates the kernel's bf16 matmul inputs.
    y_bf16 = reference_forward(x, params, emulate_bf16=True)
    assert jnp.allclose(y, y_bf16, atol=5e-3, rtol=5e-3), "mismatch vs bf16 reference"

    # Loose sanity check vs the full-f32 reference (bf16 input rounding only).
    y_f32 = reference_forward(x, params, emulate_bf16=False)
    assert jnp.allclose(y, y_f32, atol=5e-2, rtol=5e-2), "mismatch vs f32 reference"

    print("KERNEL_OK")
</pallas_src>

<mosaic_0001>
module attributes {stable_mosaic.version = 11 : i64} {
  func.func @kernel(%arg0: i32, %arg1: memref<256x128xbf16, #tpu.memory_space<vmem>>, %arg2: memref<128x128xbf16, #tpu.memory_space<vmem>>, %arg3: memref<128x128xbf16, #tpu.memory_space<vmem>>, %arg4: memref<128x128xbf16, #tpu.memory_space<vmem>>, %arg5: memref<128x128xbf16, #tpu.memory_space<vmem>>, %arg6: memref<128x128xbf16, #tpu.memory_space<vmem>>, %arg7: memref<128x128xbf16, #tpu.memory_space<vmem>>, %arg8: memref<8x128xf32, #tpu.memory_space<vmem>>, %arg9: memref<256x128xf32, #tpu.memory_space<vmem>>) attributes {dimension_semantics = [#tpu.dimension_semantics<parallel>], iteration_bounds = array<i64: 1>, scalar_prefetch = 0 : i64, scratch_operands = 0 : i64, tpu.core_type = #tpu.core_type<tc>, window_params = [{transform_indices = @transform_0, window_bounds = array<i64: 256, 128>}, {pipeline_mode = #tpu.pipeline_mode<synchronous>, transform_indices = @transform_1, window_bounds = array<i64: 128, 128>}, {pipeline_mode = #tpu.pipeline_mode<synchronous>, transform_indices = @transform_2, window_bounds = array<i64: 128, 128>}, {pipeline_mode = #tpu.pipeline_mode<synchronous>, transform_indices = @transform_3, window_bounds = array<i64: 128, 128>}, {pipeline_mode = #tpu.pipeline_mode<synchronous>, transform_indices = @transform_4, window_bounds = array<i64: 128, 128>}, {pipeline_mode = #tpu.pipeline_mode<synchronous>, transform_indices = @transform_5, window_bounds = array<i64: 128, 128>}, {pipeline_mode = #tpu.pipeline_mode<synchronous>, transform_indices = @transform_6, window_bounds = array<i64: 128, 128>}, {pipeline_mode = #tpu.pipeline_mode<synchronous>, transform_indices = @transform_7, window_bounds = array<i64: 8, 128>}, {transform_indices = @transform_8, window_bounds = array<i64: 256, 128>}]} {
    %c0 = arith.constant 0 : index
    %c0_0 = arith.constant 0 : index
    %0 = vector.load %arg8[%c0, %c0_0] : memref<8x128xf32, #tpu.memory_space<vmem>>, vector<8x128xf32>
    %c0_1 = arith.constant 0 : index
    %c0_2 = arith.constant 0 : index
    %1 = vector.load %arg1[%c0_1, %c0_2] : memref<256x128xbf16, #tpu.memory_space<vmem>>, vector<256x128xbf16>
    %c0_3 = arith.constant 0 : index
    %c0_4 = arith.constant 0 : index
    %2 = vector.load %arg2[%c0_3, %c0_4] : memref<128x128xbf16, #tpu.memory_space<vmem>>, vector<128x128xbf16>
    %cst = arith.constant dense<0.000000e+00> : vector<256x128xf32>
    %3 = tpu.matmul %1, %2, %cst {dimension_numbers = #tpu.dot_dimension_numbers<[1], [0], [0], [1], [0, 0, 1, 1], [], []>} : vector<256x128xbf16>, vector<128x128xbf16>, vector<256x128xf32> -> vector<256x128xf32>
    %4 = vector.extract_strided_slice %0 {offsets = [0, 0], sizes = [1, 128], strides = [1, 1]} : vector<8x128xf32> to vector<1x128xf32>
    %5 = vector.broadcast %4 : vector<1x128xf32> to vector<256x128xf32>
    %6 = arith.addf %3, %5 : vector<256x128xf32>
    %cst_5 = arith.constant 0.000000e+00 : f32
    %7 = vector.broadcast %cst_5 : f32 to vector<256x128xf32>
    %8 = arith.maximumf %6, %7 : vector<256x128xf32>
    %9 = arith.truncf %8 : vector<256x128xf32> to vector<256x128xbf16>
    %c0_6 = arith.constant 0 : index
    %c0_7 = arith.constant 0 : index
    %10 = vector.load %arg3[%c0_6, %c0_7] : memref<128x128xbf16, #tpu.memory_space<vmem>>, vector<128x128xbf16>
    %cst_8 = arith.constant dense<0.000000e+00> : vector<256x128xf32>
    %11 = tpu.matmul %9, %10, %cst_8 {dimension_numbers = #tpu.dot_dimension_numbers<[1], [0], [0], [1], [0, 0, 1, 1], [], []>} : vector<256x128xbf16>, vector<128x128xbf16>, vector<256x128xf32> -> vector<256x128xf32>
    %12 = vector.extract_strided_slice %0 {offsets = [1, 0], sizes = [1, 128], strides = [1, 1]} : vector<8x128xf32> to vector<1x128xf32>
    %13 = vector.broadcast %12 : vector<1x128xf32> to vector<256x128xf32>
    %14 = arith.addf %11, %13 : vector<256x128xf32>
    %cst_9 = arith.constant 0.000000e+00 : f32
    %15 = vector.broadcast %cst_9 : f32 to vector<256x128xf32>
    %16 = arith.maximumf %14, %15 : vector<256x128xf32>
    %17 = arith.truncf %16 : vector<256x128xf32> to vector<256x128xbf16>
    %c0_10 = arith.constant 0 : index
    %c0_11 = arith.constant 0 : index
    %18 = vector.load %arg4[%c0_10, %c0_11] : memref<128x128xbf16, #tpu.memory_space<vmem>>, vector<128x128xbf16>
    %cst_12 = arith.constant dense<0.000000e+00> : vector<256x128xf32>
    %19 = tpu.matmul %17, %18, %cst_12 {dimension_numbers = #tpu.dot_dimension_numbers<[1], [0], [0], [1], [0, 0, 1, 1], [], []>} : vector<256x128xbf16>, vector<128x128xbf16>, vector<256x128xf32> -> vector<256x128xf32>
    %20 = vector.extract_strided_slice %0 {offsets = [2, 0], sizes = [1, 128], strides = [1, 1]} : vector<8x128xf32> to vector<1x128xf32>
    %21 = vector.broadcast %20 : vector<1x128xf32> to vector<256x128xf32>
    %22 = arith.addf %19, %21 : vector<256x128xf32>
    %cst_13 = arith.constant 0.000000e+00 : f32
    %23 = vector.broadcast %cst_13 : f32 to vector<256x128xf32>
    %24 = arith.maximumf %22, %23 : vector<256x128xf32>
    %25 = arith.truncf %24 : vector<256x128xf32> to vector<256x128xbf16>
    %c0_14 = arith.constant 0 : index
    %c0_15 = arith.constant 0 : index
    %26 = vector.load %arg5[%c0_14, %c0_15] : memref<128x128xbf16, #tpu.memory_space<vmem>>, vector<128x128xbf16>
    %cst_16 = arith.constant dense<0.000000e+00> : vector<256x128xf32>
    %27 = tpu.matmul %25, %26, %cst_16 {dimension_numbers = #tpu.dot_dimension_numbers<[1], [0], [0], [1], [0, 0, 1, 1], [], []>} : vector<256x128xbf16>, vector<128x128xbf16>, vector<256x128xf32> -> vector<256x128xf32>
    %28 = vector.extract_strided_slice %0 {offsets = [3, 0], sizes = [1, 128], strides = [1, 1]} : vector<8x128xf32> to vector<1x128xf32>
    %29 = vector.broadcast %28 : vector<1x128xf32> to vector<256x128xf32>
    %30 = arith.addf %27, %29 : vector<256x128xf32>
    %cst_17 = arith.constant 0.000000e+00 : f32
    %31 = vector.broadcast %cst_17 : f32 to vector<256x128xf32>
    %32 = arith.maximumf %30, %31 : vector<256x128xf32>
    %33 = arith.truncf %32 : vector<256x128xf32> to vector<256x128xbf16>
    %c0_18 = arith.constant 0 : index
    %c0_19 = arith.constant 0 : index
    %34 = vector.load %arg6[%c0_18, %c0_19] : memref<128x128xbf16, #tpu.memory_space<vmem>>, vector<128x128xbf16>
    %cst_20 = arith.constant dense<0.000000e+00> : vector<256x128xf32>
    %35 = tpu.matmul %33, %34, %cst_20 {dimension_numbers = #tpu.dot_dimension_numbers<[1], [0], [0], [1], [0, 0, 1, 1], [], []>} : vector<256x128xbf16>, vector<128x128xbf16>, vector<256x128xf32> -> vector<256x128xf32>
    %36 = vector.extract_strided_slice %0 {offsets = [4, 0], sizes = [1, 128], strides = [1, 1]} : vector<8x128xf32> to vector<1x128xf32>
    %37 = vector.broadcast %36 : vector<1x128xf32> to vector<256x128xf32>
    %38 = arith.addf %35, %37 : vector<256x128xf32>
    %cst_21 = arith.constant 0.000000e+00 : f32
    %39 = vector.broadcast %cst_21 : f32 to vector<256x128xf32>
    %40 = arith.maximumf %38, %39 : vector<256x128xf32>
    %41 = arith.truncf %40 : vector<256x128xf32> to vector<256x128xbf16>
    %c0_22 = arith.constant 0 : index
    %c0_23 = arith.constant 0 : index
    %42 = vector.load %arg7[%c0_22, %c0_23] : memref<128x128xbf16, #tpu.memory_space<vmem>>, vector<128x128xbf16>
    %cst_24 = arith.constant dense<0.000000e+00> : vector<256x128xf32>
    %43 = tpu.matmul %41, %42, %cst_24 {dimension_numbers = #tpu.dot_dimension_numbers<[1], [0], [0], [1], [0, 0, 1, 1], [], []>} : vector<256x128xbf16>, vector<128x128xbf16>, vector<256x128xf32> -> vector<256x128xf32>
    %44 = vector.extract_strided_slice %0 {offsets = [5, 0], sizes = [1, 128], strides = [1, 1]} : vector<8x128xf32> to vector<1x128xf32>
    %45 = vector.broadcast %44 : vector<1x128xf32> to vector<256x128xf32>
    %46 = arith.addf %43, %45 : vector<256x128xf32>
    %47 = math.absf %46 : vector<256x128xf32>
    %cst_25 = arith.constant 0.000000e+00 : f32
    %48 = vector.broadcast %cst_25 : f32 to vector<256x128xf32>
    %49 = arith.subf %48, %47 : vector<256x128xf32>
    %50 = math.exp %49 : vector<256x128xf32>
    %cst_26 = arith.constant 1.000000e+00 : f32
    %51 = vector.broadcast %cst_26 : f32 to vector<256x128xf32>
    %52 = arith.addf %51, %50 : vector<256x128xf32>
    %cst_27 = arith.constant 1.000000e+00 : f32
    %53 = vector.broadcast %cst_27 : f32 to vector<256x128xf32>
    %54 = arith.divf %53, %52 : vector<256x128xf32>
    %cst_28 = arith.constant 0.000000e+00 : f32
    %55 = vector.broadcast %cst_28 : f32 to vector<256x128xf32>
    %56 = arith.cmpf oge, %46, %55 : vector<256x128xf32>
    %57 = arith.mulf %50, %54 : vector<256x128xf32>
    %58 = arith.select %56, %54, %57 : vector<256x128xi1>, vector<256x128xf32>
    %c0_29 = arith.constant 0 : index
    %c0_30 = arith.constant 0 : index
    %59 = vector.load %arg9[%c0_29, %c0_30] : memref<256x128xf32, #tpu.memory_space<vmem>>, vector<256x128xf32>
    tpu.vector_store %arg9[%c0_29, %c0_30], %58 {strides = array<i32>} : memref<256x128xf32, #tpu.memory_space<vmem>>, vector<256x128xf32>,
    return
  }
  func.func @transform_0(%arg0: i32) -> (i32, i32) {
    %c0_i32 = arith.constant 0 : i32
    %c0_i32_0 = arith.constant 0 : i32
    return %arg0, %c0_i32 : i32, i32
  }
  func.func @transform_1(%arg0: i32) -> (i32, i32) {
    %c0_i32 = arith.constant 0 : i32
    %c0_i32_0 = arith.constant 0 : i32
    %c0_i32_1 = arith.constant 0 : i32
    return %c0_i32, %c0_i32_0 : i32, i32
  }
  func.func @transform_2(%arg0: i32) -> (i32, i32) {
    %c0_i32 = arith.constant 0 : i32
    %c0_i32_0 = arith.constant 0 : i32
    %c0_i32_1 = arith.constant 0 : i32
    return %c0_i32, %c0_i32_0 : i32, i32
  }
  func.func @transform_3(%arg0: i32) -> (i32, i32) {
    %c0_i32 = arith.constant 0 : i32
    %c0_i32_0 = arith.constant 0 : i32
    %c0_i32_1 = arith.constant 0 : i32
    return %c0_i32, %c0_i32_0 : i32, i32
  }
  func.func @transform_4(%arg0: i32) -> (i32, i32) {
    %c0_i32 = arith.constant 0 : i32
    %c0_i32_0 = arith.constant 0 : i32
    %c0_i32_1 = arith.constant 0 : i32
    return %c0_i32, %c0_i32_0 : i32, i32
  }
  func.func @transform_5(%arg0: i32) -> (i32, i32) {
    %c0_i32 = arith.constant 0 : i32
    %c0_i32_0 = arith.constant 0 : i32
    %c0_i32_1 = arith.constant 0 : i32
    return %c0_i32, %c0_i32_0 : i32, i32
  }
  func.func @transform_6(%arg0: i32) -> (i32, i32) {
    %c0_i32 = arith.constant 0 : i32
    %c0_i32_0 = arith.constant 0 : i32
    %c0_i32_1 = arith.constant 0 : i32
    return %c0_i32, %c0_i32_0 : i32, i32
  }
  func.func @transform_7(%arg0: i32) -> (i32, i32) {
    %c0_i32 = arith.constant 0 : i32
    %c0_i32_0 = arith.constant 0 : i32
    %c0_i32_1 = arith.constant 0 : i32
    return %c0_i32, %c0_i32_0 : i32, i32
  }
  func.func @transform_8(%arg0: i32) -> (i32, i32) {
    %c0_i32 = arith.constant 0 : i32
    %c0_i32_0 = arith.constant 0 : i32
    return %arg0, %c0_i32 : i32, i32
  }
}

</mosaic_0001>

<llo_original>
// kernel: tpu_custom_call.1
$region0: #{tpu_custom_call.1}
  #allocation0 [shape = 'u32[]', space=smem, size = 0x4, offset = 0x4, fixed_abs, tag = 'smem constant byte address 0x4 - core index']
  #allocation1 [shape = 'u32[72,128]{1,0:T(1,128)}', space=vmem, size = 0x9000, scoped, tag = 'internal scratch']
  %s0 = inlined_call_operand.hbm [shape: bf16[256,128], index: 0, kind: input, shape index: {}]
  %s1 = inlined_call_operand.hbm [shape: bf16[128,128], index: 1, kind: input, shape index: {}]
  %s2 = inlined_call_operand.hbm [shape: bf16[128,128], index: 2, kind: input, shape index: {}]
  %s3 = inlined_call_operand.hbm [shape: bf16[128,128], index: 3, kind: input, shape index: {}]
  %s4 = inlined_call_operand.hbm [shape: bf16[128,128], index: 4, kind: input, shape index: {}]
  %s5 = inlined_call_operand.hbm [shape: bf16[128,128], index: 5, kind: input, shape index: {}]
  %s6 = inlined_call_operand.hbm [shape: bf16[128,128], index: 6, kind: input, shape index: {}]
  %s7 = inlined_call_operand.hbm [shape: f32[8,128], index: 7, kind: input, shape index: {}]
  %s8 = inlined_call_operand.hbm [shape: f32[256,128], index: 8, kind: output, shape index: {}]
  %s9 = sld [smem:[#allocation0]]
  $region74: #{tpu_custom_call.1} parent=0
    _
  %s11 = ssub.s32 1, %s9
  %s12 = scalar_select 0, %s11, %s9
  $region1: #{tpu_custom_call.1} parent=0
    #allocation2 [shape = 'u8[65536]{0}', space=vmem, size = 0x10000, scoped, tag = 'input window, operand 0, single buffered']
    #allocation3 [shape = 's32[1]{0}', space=sflag, size = 0x4, scoped, tag = 'scoped memory for tpu_custom_call.1']
    #allocation4 [shape = 's32[1]{0}', space=sflag, size = 0x4, scoped, tag = 'scoped memory for tpu_custom_call.1']
    #allocation5 [shape = 'u8[32768]{0}', space=vmem, size = 0x8000, scoped, tag = 'input window, operand 1, single buffered']
    #allocation6 [shape = 's32[1]{0}', space=sflag, size = 0x4, scoped, tag = 'scoped memory for tpu_custom_call.1']
    #allocation7 [shape = 'u8[32768]{0}', space=vmem, size = 0x8000, scoped, tag = 'input window, operand 2, single buffered']
    #allocation8 [shape = 'u8[32768]{0}', space=vmem, size = 0x8000, scoped, tag = 'input window, operand 3, single buffered']
    #allocation9 [shape = 's32[1]{0}', space=sflag, size = 0x4, scoped, tag = 'scoped memory for tpu_custom_call.1']
    #allocation10 [shape = 'u8[32768]{0}', space=vmem, size = 0x8000, scoped, tag = 'input window, operand 4, single buffered']
    #allocation11 [shape = 'u8[32768]{0}', space=vmem, size = 0x8000, scoped, tag = 'input window, operand 5, single buffered']
    #allocation12 [shape = 's32[1]{0}', space=sflag, size = 0x4, scoped, tag = 'scoped memory for tpu_custom_call.1']
    #allocation13 [shape = 'u8[32768]{0}', space=vmem, size = 0x8000, scoped, tag = 'input window, operand 6, single buffered']
    #allocation14 [shape = 'u8[4096]{0}', space=vmem, size = 0x1000, scoped, tag = 'input window, operand 7, single buffered']
    #allocation15 [shape = 's32[1]{0}', space=sflag, size = 0x4, scoped, tag = 'scoped memory for tpu_custom_call.1']
    #allocation16 [shape = 'u8[131072]{0}', space=vmem, size = 0x20000, scoped, tag = 'output window, operand 0, single buffered']
    %13 = vsyncpa [#allocation3], 0
    %14 = vsyncpa [#allocation6], 0
    %15 = vsyncpa [#allocation9], 0
    %16 = vsyncpa [#allocation12], 0
    %17 = vsyncpa [#allocation15], 0
    %18 = vsyncpa [#allocation4], 0
    // Predicated region
    $region2: #{tpu_custom_call.1} parent=1 // pred_check
      _
    $region3: #{tpu_custom_call.1} parent=1 // pred_check_branch
      %20 = sbr.rel (0) target = $region5
    $region4: #{tpu_custom_call.1} parent=1 // pred_region
      %22 = vsyncadd [#allocation3], 0
      %s23 = sshll.u32 %s0, 4
      %s24 = int_to_ptr.hbm [resolvable:$true] %s23
      %s25 = sshll.u32 [#allocation2], 4
      %s26 = int_to_ptr.vmem [resolvable:$true] %s25
      %31 = dma.hbm_to_vmem [thread:$0]  %s24, 2048, %s26, [#allocation3], 64, 64, 4
    $region5: #{tpu_custom_call.1} parent=1 // pred_fallthru
      _
    // Predicated region
    $region6: #{tpu_custom_call.1} parent=1 // pred_check
      _
    $region7: #{tpu_custom_call.1} parent=1 // pred_check_branch
      %33 = sbr.rel (0) target = $region9
    $region8: #{tpu_custom_call.1} parent=1 // pred_region
      %35 = vsyncadd [#allocation6], 0
      %s36 = sshll.u32 %s1, 4
      %s37 = int_to_ptr.hbm [resolvable:$true] %s36
      %s38 = sshll.u32 [#allocation5], 4
      %s39 = int_to_ptr.vmem [resolvable:$true] %s38
      %44 = dma.hbm_to_vmem [thread:$0]  %s37, 1024, %s39, [#allocation6], 64, 64, 4
    $region9: #{tpu_custom_call.1} parent=1 // pred_fallthru
      _
    // Predicated region
    $region10: #{tpu_custom_call.1} parent=1 // pred_check
      _
    $region11: #{tpu_custom_call.1} parent=1 // pred_check_branch
      %46 = sbr.rel (0) target = $region13
    $region12: #{tpu_custom_call.1} parent=1 // pred_region
      %48 = vsyncadd [#allocation6], 0
      %s49 = sshll.u32 %s2, 4
      %s50 = int_to_ptr.hbm [resolvable:$true] %s49
      %s51 = sshll.u32 [#allocation7], 4
      %s52 = int_to_ptr.vmem [resolvable:$true] %s51
      %57 = dma.hbm_to_vmem [thread:$0]  %s50, 1024, %s52, [#allocation6], 64, 64, 4
    $region13: #{tpu_custom_call.1} parent=1 // pred_fallthru
      _
    // Predicated region
    $region14: #{tpu_custom_call.1} parent=1 // pred_check
      _
    $region15: #{tpu_custom_call.1} parent=1 // pred_check_branch
      %59 = sbr.rel (0) target = $region17
    $region16: #{tpu_custom_call.1} parent=1 // pred_region
      %61 = vsyncadd [#allocation9], 0
      %s62 = sshll.u32 %s3, 4
      %s63 = int_to_ptr.hbm [resolvable:$true] %s62
      %s64 = sshll.u32 [#allocation8], 4
      %s65 = int_to_ptr.vmem [resolvable:$true] %s64
      %70 = dma.hbm_to_vmem [thread:$0]  %s63, 1024, %s65, [#allocation9], 64, 64, 4
    $region17: #{tpu_custom_call.1} parent=1 // pred_fallthru
      _
    // Predicated region
    $region18: #{tpu_custom_call.1} parent=1 // pred_check
      _
    $region19: #{tpu_custom_call.1} parent=1 // pred_check_branch
      %72 = sbr.rel (0) target = $region21
    $region20: #{tpu_custom_call.1} parent=1 // pred_region
      %74 = vsyncadd [#allocation9], 0
      %s75 = sshll.u32 %s4, 4
      %s76 = int_to_ptr.hbm [resolvable:$true] %s75
      %s77 = sshll.u32 [#allocation10], 4
      %s78 = int_to_ptr.vmem [resolvable:$true] %s77
      %83 = dma.hbm_to_vmem [thread:$0]  %s76, 1024, %s78, [#allocation9], 64, 64, 4
    $region21: #{tpu_custom_call.1} parent=1 // pred_fallthru
      _
    // Predicated region
    $region22: #{tpu_custom_call.1} parent=1 // pred_check
      _
    $region23: #{tpu_custom_call.1} parent=1 // pred_check_branch
      %85 = sbr.rel (0) target = $region25
    $region24: #{tpu_custom_call.1} parent=1 // pred_region
      %87 = vsyncadd [#allocation12], 0
      %s88 = sshll.u32 %s5, 4
      %s89 = int_to_ptr.hbm [resolvable:$true] %s88
      %s90 = sshll.u32 [#allocation11], 4
      %s91 = int_to_ptr.vmem [resolvable:$true] %s90
      %96 = dma.hbm_to_vmem [thread:$0]  %s89, 1024, %s91, [#allocation12], 64, 64, 4
    $region25: #{tpu_custom_call.1} parent=1 // pred_fallthru
      _
    // Predicated region
    $region26: #{tpu_custom_call.1} parent=1 // pred_check
      _
    $region27: #{tpu_custom_call.1} parent=1 // pred_check_branch
      %98 = sbr.rel (0) target = $region29
    $region28: #{tpu_custom_call.1} parent=1 // pred_region
      %100 = vsyncadd [#allocation12], 0
      %s101 = sshll.u32 %s6, 4
      %s102 = int_to_ptr.hbm [resolvable:$true] %s101
      %s103 = sshll.u32 [#allocation13], 4
      %s104 = int_to_ptr.vmem [resolvable:$true] %s103
      %109 = dma.hbm_to_vmem [thread:$0]  %s102, 1024, %s104, [#allocation12], 64, 64, 4
    $region29: #{tpu_custom_call.1} parent=1 // pred_fallthru
      _
    // Predicated region
    $region30: #{tpu_custom_call.1} parent=1 // pred_check
      _
    $region31: #{tpu_custom_call.1} parent=1 // pred_check_branch
      %111 = sbr.rel (0) target = $region33
    $region32: #{tpu_custom_call.1} parent=1 // pred_region
      %113 = vsyncadd [#allocation15], 0
      %s115 = sshll.u32 %s7, 4
      %s116 = int_to_ptr.hbm [resolvable:$true] %s115
      %s117 = sshll.u32 [#allocation14], 4
      %s118 = int_to_ptr.vmem [resolvable:$true] %s117
      %120 = dma.hbm_to_vmem [thread:$0]  %s116, 128, %s118, [#allocation15]
    $region33: #{tpu_custom_call.1} parent=1 // pred_fallthru
      _
    // Predicated region
    $region34: #{tpu_custom_call.1} parent=1 // pred_check
      _
    $region35: #{tpu_custom_call.1} parent=1 // pred_check_branch
      %122 = sbr.rel (0) target = $region37
    $region36: #{tpu_custom_call.1} parent=1 // pred_region
      %124 = dma.done [#allocation3], 2048
    $region37: #{tpu_custom_call.1} parent=1 // pred_fallthru
      _
    // Predicated region
    $region38: #{tpu_custom_call.1} parent=1 // pred_check
      _
    $region39: #{tpu_custom_call.1} parent=1 // pred_check_branch
      %126 = sbr.rel (0) target = $region41
    $region40: #{tpu_custom_call.1} parent=1 // pred_region
      %128 = dma.done [#allocation6], 1024
    $region41: #{tpu_custom_call.1} parent=1 // pred_fallthru
      _
    // Predicated region
    $region42: #{tpu_custom_call.1} parent=1 // pred_check
      _
    $region43: #{tpu_custom_call.1} parent=1 // pred_check_branch
      %130 = sbr.rel (0) target = $region45
    $region44: #{tpu_custom_call.1} parent=1 // pred_region
      %132 = dma.done [#allocation6], 1024
    $region45: #{tpu_custom_call.1} parent=1 // pred_fallthru
      _
    // Predicated region
    $region46: #{tpu_custom_call.1} parent=1 // pred_check
      _
    $region47: #{tpu_custom_call.1} parent=1 // pred_check_branch
      %134 = sbr.rel (0) target = $region49
    $region48: #{tpu_custom_call.1} parent=1 // pred_region
      %136 = dma.done [#allocation9], 1024
    $region49: #{tpu_custom_call.1} parent=1 // pred_fallthru
      _
    // Predicated region
    $region50: #{tpu_custom_call.1} parent=1 // pred_check
      _
    $region51: #{tpu_custom_call.1} parent=1 // pred_check_branch
      %138 = sbr.rel (0) target = $region53
    $region52: #{tpu_custom_call.1} parent=1 // pred_region
      %140 = dma.done [#allocation9], 1024
    $region53: #{tpu_custom_call.1} parent=1 // pred_fallthru
      _
    // Predicated region
    $region54: #{tpu_custom_call.1} parent=1 // pred_check
      _
    $region55: #{tpu_custom_call.1} parent=1 // pred_check_branch
      %142 = sbr.rel (0) target = $region57
    $region56: #{tpu_custom_call.1} parent=1 // pred_region
      %144 = dma.done [#allocation12], 1024
    $region57: #{tpu_custom_call.1} parent=1 // pred_fallthru
      _
    // Predicated region
    $region58: #{tpu_custom_call.1} parent=1 // pred_check
      _
    $region59: #{tpu_custom_call.1} parent=1 // pred_check_branch
      %146 = sbr.rel (0) target = $region61
    $region60: #{tpu_custom_call.1} parent=1 // pred_region
      %148 = dma.done [#allocation12], 1024
    $region61: #{tpu_custom_call.1} parent=1 // pred_fallthru
      _
    // Predicated region
    $region62: #{tpu_custom_call.1} parent=1 // pred_check
      _
    $region63: #{tpu_custom_call.1} parent=1 // pred_check_branch
      %150 = sbr.rel (0) target = $region65
    $region64: #{tpu_custom_call.1} parent=1 // pred_region
      %152 = dma.done [#allocation15], 128
    $region65: #{tpu_custom_call.1} parent=1 // pred_fallthru
      _
    %v153 = vld [vmem:[#allocation14] sm:$0xff]
    %v154 = vld [vmem:[#allocation2] sm:$0xf]
    %v155 = vld [vmem:[#allocation2 + $0x4] sm:$0xf]
    %v156 = vld [vmem:[#allocation2 + $0x8] sm:$0xf]
    %v157 = vld [vmem:[#allocation2 + $0xc] sm:$0xf]
    %v158 = vld [vmem:[#allocation2 + $0x10] sm:$0xf]
    %v159 = vld [vmem:[#allocation2 + $0x14] sm:$0xf]
    %v160 = vld [vmem:[#allocation2 + $0x18] sm:$0xf]
    %v161 = vld [vmem:[#allocation2 + $0x1c] sm:$0xf]
    %v162 = vld [vmem:[#allocation2 + $0x20] sm:$0xf]
    %v163 = vld [vmem:[#allocation2 + $0x24] sm:$0xf]
    %v164 = vld [vmem:[#allocation2 + $0x28] sm:$0xf]
    %v165 = vld [vmem:[#allocation2 + $0x2c] sm:$0xf]
    %v166 = vld [vmem:[#allocation2 + $0x30] sm:$0xf]
    %v167 = vld [vmem:[#allocation2 + $0x34] sm:$0xf]
    %v168 = vld [vmem:[#allocation2 + $0x38] sm:$0xf]
    %v169 = vld [vmem:[#allocation2 + $0x3c] sm:$0xf]
    %v170 = vld [vmem:[#allocation2 + $0x40] sm:$0xf]
    %v171 = vld [vmem:[#allocation2 + $0x44] sm:$0xf]
    %v172 = vld [vmem:[#allocation2 + $0x48] sm:$0xf]
    %v173 = vld [vmem:[#allocation2 + $0x4c] sm:$0xf]
    %v174 = vld [vmem:[#allocation2 + $0x50] sm:$0xf]
    %v175 = vld [vmem:[#allocation2 + $0x54] sm:$0xf]
    %v176 = vld [vmem:[#allocation2 + $0x58] sm:$0xf]
    %v177 = vld [vmem:[#allocation2 + $0x5c] sm:$0xf]
    %v178 = vld [vmem:[#allocation2 + $0x60] sm:$0xf]
    %v179 = vld [vmem:[#allocation2 + $0x64] sm:$0xf]
    %v180 = vld [vmem:[#allocation2 + $0x68] sm:$0xf]
    %v181 = vld [vmem:[#allocation2 + $0x6c] sm:$0xf]
    %v182 = vld [vmem:[#allocation2 + $0x70] sm:$0xf]
    %v183 = vld [vmem:[#allocation2 + $0x74] sm:$0xf]
    %v184 = vld [vmem:[#allocation2 + $0x78] sm:$0xf]
    %v185 = vld [vmem:[#allocation2 + $0x7c] sm:$0xf]
    %v186 = vld [vmem:[#allocation5] sm:$0xf]
    %v187 = vld [vmem:[#allocation5 + $0x4] sm:$0xf]
    %v188 = vld [vmem:[#allocation5 + $0x8] sm:$0xf]
    %v189 = vld [vmem:[#allocation5 + $0xc] sm:$0xf]
    %v190 = vld [vmem:[#allocation5 + $0x10] sm:$0xf]
    %v191 = vld [vmem:[#allocation5 + $0x14] sm:$0xf]
    %v192 = vld [vmem:[#allocation5 + $0x18] sm:$0xf]
    %v193 = vld [vmem:[#allocation5 + $0x1c] sm:$0xf]
    %v194 = vld [vmem:[#allocation5 + $0x20] sm:$0xf]
    %v195 = vld [vmem:[#allocation5 + $0x24] sm:$0xf]
    %v196 = vld [vmem:[#allocation5 + $0x28] sm:$0xf]
    %v197 = vld [vmem:[#allocation5 + $0x2c] sm:$0xf]
    %v198 = vld [vmem:[#allocation5 + $0x30] sm:$0xf]
    %v199 = vld [vmem:[#allocation5 + $0x34] sm:$0xf]
    %v200 = vld [vmem:[#allocation5 + $0x38] sm:$0xf]
    %v201 = vld [vmem:[#allocation5 + $0x3c] sm:$0xf]
    %v202 = vperm.slane %v153, 0
    %v235 = vunpack.c.l.b16 %v154
    %v236 = vunpack.c.l.b16 %v155
    %v237 = vunpack.c.l.b16 %v156
    %v238 = vunpack.c.l.b16 %v157
    %v239 = vunpack.c.l.b16 %v158
    %v240 = vunpack.c.l.b16 %v159
    %v241 = vunpack.c.l.b16 %v160
    %v242 = vunpack.c.l.b16 %v161
    %v243 = vunpack.c.l.b16 %v162
    %v244 = vunpack.c.l.b16 %v163
    %v245 = vunpack.c.l.b16 %v164
    %v246 = vunpack.c.l.b16 %v165
    %v247 = vunpack.c.l.b16 %v166
    %v248 = vunpack.c.l.b16 %v167
    %v249 = vunpack.c.l.b16 %v168
    %v250 = vunpack.c.l.b16 %v169
    %v251 = vunpack.c.l.b16 %v170
    %v252 = vunpack.c.l.b16 %v171
    %v253 = vunpack.c.l.b16 %v172
    %v254 = vunpack.c.l.b16 %v173
    %v255 = vunpack.c.l.b16 %v174
    %v256 = vunpack.c.l.b16 %v175
    %v257 = vunpack.c.l.b16 %v176
    %v258 = vunpack.c.l.b16 %v177
    %v259 = vunpack.c.l.b16 %v178
    %v260 = vunpack.c.l.b16 %v179
    %v261 = vunpack.c.l.b16 %v180
    %v262 = vunpack.c.l.b16 %v181
    %v263 = vunpack.c.l.b16 %v182
    %v264 = vunpack.c.l.b16 %v183
    %v265 = vunpack.c.l.b16 %v184
    %v266 = vunpack.c.l.b16 %v185
    %v267 = vpack.c.b16 %v236, %v235
    %v268 = vpack.c.b16 %v238, %v237
    %v269 = vpack.c.b16 %v240, %v239
    %v270 = vpack.c.b16 %v242, %v241
    %v271 = vpack.c.b16 %v244, %v243
    %v272 = vpack.c.b16 %v246, %v245
    %v273 = vpack.c.b16 %v248, %v247
    %v274 = vpack.c.b16 %v250, %v249
    %v275 = vpack.c.b16 %v252, %v251
    %v276 = vpack.c.b16 %v254, %v253
    %v277 = vpack.c.b16 %v256, %v255
    %v278 = vpack.c.b16 %v258, %v257
    %v279 = vpack.c.b16 %v260, %v259
    %v280 = vpack.c.b16 %v262, %v261
    %v281 = vpack.c.b16 %v264, %v263
    %v282 = vpack.c.b16 %v266, %v265
    %v315 = vunpack.c.l.b16 %v186
    %v316 = vunpack.c.l.b16 %v187
    %v317 = vunpack.c.l.b16 %v188
    %v318 = vunpack.c.l.b16 %v189
    %v319 = vunpack.c.l.b16 %v190
    %v320 = vunpack.c.l.b16 %v191
    %v321 = vunpack.c.l.b16 %v192
    %v322 = vunpack.c.l.b16 %v193
    %v323 = vunpack.c.l.b16 %v194
    %v324 = vunpack.c.l.b16 %v195
    %v325 = vunpack.c.l.b16 %v196
    %v326 = vunpack.c.l.b16 %v197
    %v327 = vunpack.c.l.b16 %v198
    %v328 = vunpack.c.l.b16 %v199
    %v329 = vunpack.c.l.b16 %v200
    %v330 = vunpack.c.l.b16 %v201
    %v331 = vpack.c.b16 %v316, %v315
    %v332 = vpack.c.b16 %v318, %v317
    %v333 = vpack.c.b16 %v320, %v319
    %v334 = vpack.c.b16 %v322, %v321
    %v335 = vpack.c.b16 %v324, %v323
    %v336 = vpack.c.b16 %v326, %v325
    %v337 = vpack.c.b16 %v328, %v327
    %v338 = vpack.c.b16 %v330, %v329
    %347 = vmatpush.bf16.msra.mxu0 %v338
    %348 = vmatpush.bf16.msra.mxu0 %v337
    %349 = vmatpush.bf16.msra.mxu0 %v336
    %350 = vmatpush.bf16.msra.mxu0 %v335
    %351 = vmatpush.bf16.msra.mxu0 %v334
    %352 = vmatpush.bf16.msra.mxu0 %v333
    %353 = vmatpush.bf16.msra.mxu0 %v332
    %354 = vmatpush.bf16.msra.mxu0 %v331
    %355 = vmatmul.bf16.gmra.mxu0 %v267
    %v356 = vpop.f32.mrf.mxu0
    %v357 = vadd.f32 %v202, %v356
    %v358 = vpop.f32.mrf.mxu0
    %v359 = vadd.f32 %v202, %v358
    %360 = vmatmul.bf16.gmra.mxu0 %v268
    %v361 = vpop.f32.mrf.mxu0
    %v362 = vadd.f32 %v202, %v361
    %v363 = vpop.f32.mrf.mxu0
    %v364 = vadd.f32 %v202, %v363
    %365 = vmatmul.bf16.gmra.mxu0 %v269
    %v366 = vpop.f32.mrf.mxu0
    %v367 = vadd.f32 %v202, %v366
    %v368 = vpop.f32.mrf.mxu0
    %v369 = vadd.f32 %v202, %v368
    %370 = vmatmul.bf16.gmra.mxu0 %v270
    %v371 = vpop.f32.mrf.mxu0
    %v372 = vadd.f32 %v202, %v371
    %v373 = vpop.f32.mrf.mxu0
    %v374 = vadd.f32 %v202, %v373
    %375 = vmatmul.bf16.gmra.mxu0 %v271
    %v376 = vpop.f32.mrf.mxu0
    %v377 = vadd.f32 %v202, %v376
    %v378 = vpop.f32.mrf.mxu0
    %v379 = vadd.f32 %v202, %v378
    %380 = vmatmul.bf16.gmra.mxu0 %v272
    %v381 = vpop.f32.mrf.mxu0
    %v382 = vadd.f32 %v202, %v381
    %v383 = vpop.f32.mrf.mxu0
    %v384 = vadd.f32 %v202, %v383
    %385 = vmatmul.bf16.gmra.mxu0 %v273
    %v386 = vpop.f32.mrf.mxu0
    %v387 = vadd.f32 %v202, %v386
    %v388 = vpop.f32.mrf.mxu0
    %v389 = vadd.f32 %v202, %v388
    %390 = vmatmul.bf16.gmra.mxu0 %v274
    %v391 = vpop.f32.mrf.mxu0
    %v392 = vadd.f32 %v202, %v391
    %v393 = vpop.f32.mrf.mxu0
    %v394 = vadd.f32 %v202, %v393
    %395 = vmatmul.bf16.gmra.mxu0 %v275
    %v396 = vpop.f32.mrf.mxu0
    %v397 = vadd.f32 %v202, %v396
    %v398 = vpop.f32.mrf.mxu0
    %v399 = vadd.f32 %v202, %v398
    %400 = vmatmul.bf16.gmra.mxu0 %v276
    %v401 = vpop.f32.mrf.mxu0
    %v402 = vadd.f32 %v202, %v401
    %v403 = vpop.f32.mrf.mxu0
    %v404 = vadd.f32 %v202, %v403
    %405 = vmatmul.bf16.gmra.mxu0 %v277
    %v406 = vpop.f32.mrf.mxu0
    %v407 = vadd.f32 %v202, %v406
    %v408 = vpop.f32.mrf.mxu0
    %v409 = vadd.f32 %v202, %v408
    %410 = vmatmul.bf16.gmra.mxu0 %v278
    %v411 = vpop.f32.mrf.mxu0
    %v412 = vadd.f32 %v202, %v411
    %v413 = vpop.f32.mrf.mxu0
    %v414 = vadd.f32 %v202, %v413
    %415 = vmatmul.bf16.gmra.mxu0 %v279
    %v416 = vpop.f32.mrf.mxu0
    %v417 = vadd.f32 %v202, %v416
    %v418 = vpop.f32.mrf.mxu0
    %v419 = vadd.f32 %v202, %v418
    %420 = vmatmul.bf16.gmra.mxu0 %v280
    %v421 = vpop.f32.mrf.mxu0
    %v422 = vadd.f32 %v202, %v421
    %v423 = vpop.f32.mrf.mxu0
    %v424 = vadd.f32 %v202, %v423
    %425 = vmatmul.bf16.gmra.mxu0 %v281
    %v426 = vpop.f32.mrf.mxu0
    %v427 = vadd.f32 %v202, %v426
    %v428 = vpop.f32.mrf.mxu0
    %v429 = vadd.f32 %v202, %v428
    %430 = vmatmul.bf16.gmra.mxu0 %v282
    %v431 = vpop.f32.mrf.mxu0
    %v432 = vadd.f32 %v202, %v431
    %v433 = vpop.f32.mrf.mxu0
    %v434 = vadd.f32 %v202, %v433
    %435 = vdwg.mxu0
    %v436 = vmax.f32 %v357, 0.0
    %v437 = vmax.f32 %v359, 0.0
    %v438 = vmax.f32 %v362, 0.0
    %v439 = vmax.f32 %v364, 0.0
    %v440 = vmax.f32 %v367, 0.0
    %v441 = vmax.f32 %v369, 0.0
    %v442 = vmax.f32 %v372, 0.0
    %v443 = vmax.f32 %v374, 0.0
    %v444 = vmax.f32 %v377, 0.0
    %v445 = vmax.f32 %v379, 0.0
    %v446 = vmax.f32 %v382, 0.0
    %v447 = vmax.f32 %v384, 0.0
    %v448 = vmax.f32 %v387, 0.0
    %v449 = vmax.f32 %v389, 0.0
    %v450 = vmax.f32 %v392, 0.0
    %v451 = vmax.f32 %v394, 0.0
    %v452 = vmax.f32 %v397, 0.0
    %v453 = vmax.f32 %v399, 0.0
    %v454 = vmax.f32 %v402, 0.0
    %v455 = vmax.f32 %v404, 0.0
    %v456 = vmax.f32 %v407, 0.0
    %v457 = vmax.f32 %v409, 0.0
    %v458 = vmax.f32 %v412, 0.0
    %v459 = vmax.f32 %v414, 0.0
    %v460 = vmax.f32 %v417, 0.0
    %v461 = vmax.f32 %v419, 0.0
    %v462 = vmax.f32 %v422, 0.0
    %v463 = vmax.f32 %v424, 0.0
    %v464 = vmax.f32 %v427, 0.0
    %v465 = vmax.f32 %v429, 0.0
    %v466 = vmax.f32 %v432, 0.0
    %v467 = vmax.f32 %v434, 0.0
    %v468 = vpack.c.bf16 %v437, %v436
    %v469 = vpack.c.bf16 %v439, %v438
    %v470 = vpack.c.bf16 %v441, %v440
    %v471 = vpack.c.bf16 %v443, %v442
    %v472 = vpack.c.bf16 %v445, %v444
    %v473 = vpack.c.bf16 %v447, %v446
    %v474 = vpack.c.bf16 %v449, %v448
    %v475 = vpack.c.bf16 %v451, %v450
    %v476 = vpack.c.bf16 %v453, %v452
    %v477 = vpack.c.bf16 %v455, %v454
    %v478 = vpack.c.bf16 %v457, %v456
    %v479 = vpack.c.bf16 %v459, %v458
    %v480 = vpack.c.bf16 %v461, %v460
    %v481 = vpack.c.bf16 %v463, %v462
    %v482 = vpack.c.bf16 %v465, %v464
    %v483 = vpack.c.bf16 %v467, %v466
    %v484 = vld [vmem:[#allocation7] sm:$0xf]
    %v485 = vld [vmem:[#allocation7 + $0x4] sm:$0xf]
    %v486 = vld [vmem:[#allocation7 + $0x8] sm:$0xf]
    %v487 = vld [vmem:[#allocation7 + $0xc] sm:$0xf]
    %v488 = vld [vmem:[#allocation7 + $0x10] sm:$0xf]
    %v489 = vld [vmem:[#allocation7 + $0x14] sm:$0xf]
    %v490 = vld [vmem:[#allocation7 + $0x18] sm:$0xf]
    %v491 = vld [vmem:[#allocation7 + $0x1c] sm:$0xf]
    %v492 = vld [vmem:[#allocation7 + $0x20] sm:$0xf]
    %v493 = vld [vmem:[#allocation7 + $0x24] sm:$0xf]
    %v494 = vld [vmem:[#allocation7 + $0x28] sm:$0xf]
    %v495 = vld [vmem:[#allocation7 + $0x2c] sm:$0xf]
    %v496 = vld [vmem:[#allocation7 + $0x30] sm:$0xf]
    %v497 = vld [vmem:[#allocation7 + $0x34] sm:$0xf]
    %v498 = vld [vmem:[#allocation7 + $0x38] sm:$0xf]
    %v499 = vld [vmem:[#allocation7 + $0x3c] sm:$0xf]
    %v500 = vperm.slane %v153, 1
    %v517 = vunpack.c.l.b16 %v484
    %v518 = vunpack.c.l.b16 %v485
    %v519 = vunpack.c.l.b16 %v486
    %v520 = vunpack.c.l.b16 %v487
    %v521 = vunpack.c.l.b16 %v488
    %v522 = vunpack.c.l.b16 %v489
    %v523 = vunpack.c.l.b16 %v490
    %v524 = vunpack.c.l.b16 %v491
    %v525 = vunpack.c.l.b16 %v492
    %v526 = vunpack.c.l.b16 %v493
    %v527 = vunpack.c.l.b16 %v494
    %v528 = vunpack.c.l.b16 %v495
    %v529 = vunpack.c.l.b16 %v496
    %v530 = vunpack.c.l.b16 %v497
    %v531 = vunpack.c.l.b16 %v498
    %v532 = vunpack.c.l.b16 %v499
    %v533 = vpack.c.b16 %v518, %v517
    %v534 = vpack.c.b16 %v520, %v519
    %v535 = vpack.c.b16 %v522, %v521
    %v536 = vpack.c.b16 %v524, %v523
    %v537 = vpack.c.b16 %v526, %v525
    %v538 = vpack.c.b16 %v528, %v527
    %v539 = vpack.c.b16 %v530, %v529
    %v540 = vpack.c.b16 %v532, %v531
    %549 = vmatpush.bf16.msra.mxu0 %v540
    %550 = vmatpush.bf16.msra.mxu0 %v539
    %551 = vmatpush.bf16.msra.mxu0 %v538
    %552 = vmatpush.bf16.msra.mxu0 %v537
    %553 = vmatpush.bf16.msra.mxu0 %v536
    %554 = vmatpush.bf16.msra.mxu0 %v535
    %555 = vmatpush.bf16.msra.mxu0 %v534
    %556 = vmatpush.bf16.msra.mxu0 %v533
    %557 = vmatmul.bf16.gmra.mxu0 %v468
    %v558 = vpop.f32.mrf.mxu0
    %v559 = vadd.f32 %v500, %v558
    %v560 = vpop.f32.mrf.mxu0
    %v561 = vadd.f32 %v500, %v560
    %562 = vmatmul.bf16.gmra.mxu0 %v469
    %v563 = vpop.f32.mrf.mxu0
    %v564 = vadd.f32 %v500, %v563
    %v565 = vpop.f32.mrf.mxu0
    %v566 = vadd.f32 %v500, %v565
    %567 = vmatmul.bf16.gmra.mxu0 %v470
    %v568 = vpop.f32.mrf.mxu0
    %v569 = vadd.f32 %v500, %v568
    %v570 = vpop.f32.mrf.mxu0
    %v571 = vadd.f32 %v500, %v570
    %572 = vmatmul.bf16.gmra.mxu0 %v471
    %v573 = vpop.f32.mrf.mxu0
    %v574 = vadd.f32 %v500, %v573
    %v575 = vpop.f32.mrf.mxu0
    %v576 = vadd.f32 %v500, %v575
    %577 = vmatmul.bf16.gmra.mxu0 %v472
    %v578 = vpop.f32.mrf.mxu0
    %v579 = vadd.f32 %v500, %v578
    %v580 = vpop.f32.mrf.mxu0
    %v581 = vadd.f32 %v500, %v580
    %582 = vmatmul.bf16.gmra.mxu0 %v473
    %v583 = vpop.f32.mrf.mxu0
    %v584 = vadd.f32 %v500, %v583
    %v585 = vpop.f32.mrf.mxu0
    %v586 = vadd.f32 %v500, %v585
    %587 = vmatmul.bf16.gmra.mxu0 %v474
    %v588 = vpop.f32.mrf.mxu0
    %v589 = vadd.f32 %v500, %v588
    %v590 = vpop.f32.mrf.mxu0
    %v591 = vadd.f32 %v500, %v590
    %592 = vmatmul.bf16.gmra.mxu0 %v475
    %v593 = vpop.f32.mrf.mxu0
    %v594 = vadd.f32 %v500, %v593
    %v595 = vpop.f32.mrf.mxu0
    %v596 = vadd.f32 %v500, %v595
    %597 = vmatmul.bf16.gmra.mxu0 %v476
    %v598 = vpop.f32.mrf.mxu0
    %v599 = vadd.f32 %v500, %v598
    %v600 = vpop.f32.mrf.mxu0
    %v601 = vadd.f32 %v500, %v600
    %602 = vmatmul.bf16.gmra.mxu0 %v477
    %v603 = vpop.f32.mrf.mxu0
    %v604 = vadd.f32 %v500, %v603
    %v605 = vpop.f32.mrf.mxu0
    %v606 = vadd.f32 %v500, %v605
    %607 = vmatmul.bf16.gmra.mxu0 %v478
    %v608 = vpop.f32.mrf.mxu0
    %v609 = vadd.f32 %v500, %v608
    %v610 = vpop.f32.mrf.mxu0
    %v611 = vadd.f32 %v500, %v610
    %612 = vmatmul.bf16.gmra.mxu0 %v479
    %v613 = vpop.f32.mrf.mxu0
    %v614 = vadd.f32 %v500, %v613
    %v615 = vpop.f32.mrf.mxu0
    %v616 = vadd.f32 %v500, %v615
    %617 = vmatmul.bf16.gmra.mxu0 %v480
    %v618 = vpop.f32.mrf.mxu0
    %v619 = vadd.f32 %v500, %v618
    %v620 = vpop.f32.mrf.mxu0
    %v621 = vadd.f32 %v500, %v620
    %622 = vmatmul.bf16.gmra.mxu0 %v481
    %v623 = vpop.f32.mrf.mxu0
    %v624 = vadd.f32 %v500, %v623
    %v625 = vpop.f32.mrf.mxu0
    %v626 = vadd.f32 %v500, %v625
    %627 = vmatmul.bf16.gmra.mxu0 %v482
    %v628 = vpop.f32.mrf.mxu0
    %v629 = vadd.f32 %v500, %v628
    %v630 = vpop.f32.mrf.mxu0
    %v631 = vadd.f32 %v500, %v630
    %632 = vmatmul.bf16.gmra.mxu0 %v483
    %v633 = vpop.f32.mrf.mxu0
    %v634 = vadd.f32 %v500, %v633
    %v635 = vpop.f32.mrf.mxu0
    %v636 = vadd.f32 %v500, %v635
    %637 = vdwg.mxu0
    %v638 = vmax.f32 %v559, 0.0
    %v639 = vmax.f32 %v561, 0.0
    %v640 = vmax.f32 %v564, 0.0
    %v641 = vmax.f32 %v566, 0.0
    %v642 = vmax.f32 %v569, 0.0
    %v643 = vmax.f32 %v571, 0.0
    %v644 = vmax.f32 %v574, 0.0
    %v645 = vmax.f32 %v576, 0.0
    %v646 = vmax.f32 %v579, 0.0
    %v647 = vmax.f32 %v581, 0.0
    %v648 = vmax.f32 %v584, 0.0
    %v649 = vmax.f32 %v586, 0.0
    %v650 = vmax.f32 %v589, 0.0
    %v651 = vmax.f32 %v591, 0.0
    %v652 = vmax.f32 %v594, 0.0
    %v653 = vmax.f32 %v596, 0.0
    %v654 = vmax.f32 %v599, 0.0
    %v655 = vmax.f32 %v601, 0.0
    %v656 = vmax.f32 %v604, 0.0
    %v657 = vmax.f32 %v606, 0.0
    %v658 = vmax.f32 %v609, 0.0
    %v659 = vmax.f32 %v611, 0.0
    %v660 = vmax.f32 %v614, 0.0
    %v661 = vmax.f32 %v616, 0.0
    %v662 = vmax.f32 %v619, 0.0
    %v663 = vmax.f32 %v621, 0.0
    %v664 = vmax.f32 %v624, 0.0
    %v665 = vmax.f32 %v626, 0.0
    %v666 = vmax.f32 %v629, 0.0
    %v667 = vmax.f32 %v631, 0.0
    %v668 = vmax.f32 %v634, 0.0
    %v669 = vmax.f32 %v636, 0.0
    %v670 = vpack.c.bf16 %v639, %v638
    %v671 = vpack.c.bf16 %v641, %v640
    %v672 = vpack.c.bf16 %v643, %v642
    %v673 = vpack.c.bf16 %v645, %v644
    %v674 = vpack.c.bf16 %v647, %v646
    %v675 = vpack.c.bf16 %v649, %v648
    %v676 = vpack.c.bf16 %v651, %v650
    %v677 = vpack.c.bf16 %v653, %v652
    %v678 = vpack.c.bf16 %v655, %v654
    %v679 = vpack.c.bf16 %v657, %v656
    %v680 = vpack.c.bf16 %v659, %v658
    %v681 = vpack.c.bf16 %v661, %v660
    %v682 = vpack.c.bf16 %v663, %v662
    %v683 = vpack.c.bf16 %v665, %v664
    %v684 = vpack.c.bf16 %v667, %v666
    %v685 = vpack.c.bf16 %v669, %v668
    %v686 = vld [vmem:[#allocation8] sm:$0xf]
    %v687 = vld [vmem:[#allocation8 + $0x4] sm:$0xf]
    %v688 = vld [vmem:[#allocation8 + $0x8] sm:$0xf]
    %v689 = vld [vmem:[#allocation8 + $0xc] sm:$0xf]
    %v690 = vld [vmem:[#allocation8 + $0x10] sm:$0xf]
    %v691 = vld [vmem:[#allocation8 + $0x14] sm:$0xf]
    %v692 = vld [vmem:[#allocation8 + $0x18] sm:$0xf]
    %v693 = vld [vmem:[#allocation8 + $0x1c] sm:$0xf]
    %v694 = vld [vmem:[#allocation8 + $0x20] sm:$0xf]
    %v695 = vld [vmem:[#allocation8 + $0x24] sm:$0xf]
    %v696 = vld [vmem:[#allocation8 + $0x28] sm:$0xf]
    %v697 = vld [vmem:[#allocation8 + $0x2c] sm:$0xf]
    %v698 = vld [vmem:[#allocation8 + $0x30] sm:$0xf]
    %v699 = vld [vmem:[#allocation8 + $0x34] sm:$0xf]
    %v700 = vld [vmem:[#allocation8 + $0x38] sm:$0xf]
    %v701 = vld [vmem:[#allocation8 + $0x3c] sm:$0xf]
    %v702 = vperm.slane %v153, 2
    %v719 = vunpack.c.l.b16 %v686
    %v720 = vunpack.c.l.b16 %v687
    %v721 = vunpack.c.l.b16 %v688
    %v722 = vunpack.c.l.b16 %v689
    %v723 = vunpack.c.l.b16 %v690
    %v724 = vunpack.c.l.b16 %v691
    %v725 = vunpack.c.l.b16 %v692
    %v726 = vunpack.c.l.b16 %v693
    %v727 = vunpack.c.l.b16 %v694
    %v728 = vunpack.c.l.b16 %v695
    %v729 = vunpack.c.l.b16 %v696
    %v730 = vunpack.c.l.b16 %v697
    %v731 = vunpack.c.l.b16 %v698
    %v732 = vunpack.c.l.b16 %v699
    %v733 = vunpack.c.l.b16 %v700
    %v734 = vunpack.c.l.b16 %v701
    %v735 = vpack.c.b16 %v720, %v719
    %v736 = vpack.c.b16 %v722, %v721
    %v737 = vpack.c.b16 %v724, %v723
    %v738 = vpack.c.b16 %v726, %v725
    %v739 = vpack.c.b16 %v728, %v727
    %v740 = vpack.c.b16 %v730, %v729
    %v741 = vpack.c.b16 %v732, %v731
    %v742 = vpack.c.b16 %v734, %v733
    %751 = vmatpush.bf16.msra.mxu0 %v742
    %752 = vmatpush.bf16.msra.mxu0 %v741
    %753 = vmatpush.bf16.msra.mxu0 %v740
    %754 = vmatpush.bf16.msra.mxu0 %v739
    %755 = vmatpush.bf16.msra.mxu0 %v738
    %756 = vmatpush.bf16.msra.mxu0 %v737
    %757 = vmatpush.bf16.msra.mxu0 %v736
    %758 = vmatpush.bf16.msra.mxu0 %v735
    %759 = vmatmul.bf16.gmra.mxu0 %v670
    %v760 = vpop.f32.mrf.mxu0
    %v761 = vadd.f32 %v702, %v760
    %v762 = vpop.f32.mrf.mxu0
    %v763 = vadd.f32 %v702, %v762
    %764 = vmatmul.bf16.gmra.mxu0 %v671
    %v765 = vpop.f32.mrf.mxu0
    %v766 = vadd.f32 %v702, %v765
    %v767 = vpop.f32.mrf.mxu0
    %v768 = vadd.f32 %v702, %v767
    %769 = vmatmul.bf16.gmra.mxu0 %v672
    %v770 = vpop.f32.mrf.mxu0
    %v771 = vadd.f32 %v702, %v770
    %v772 = vpop.f32.mrf.mxu0
    %v773 = vadd.f32 %v702, %v772
    %774 = vmatmul.bf16.gmra.mxu0 %v673
    %v775 = vpop.f32.mrf.mxu0
    %v776 = vadd.f32 %v702, %v775
    %v777 = vpop.f32.mrf.mxu0
    %v778 = vadd.f32 %v702, %v777
    %779 = vmatmul.bf16.gmra.mxu0 %v674
    %v780 = vpop.f32.mrf.mxu0
    %v781 = vadd.f32 %v702, %v780
    %v782 = vpop.f32.mrf.mxu0
    %v783 = vadd.f32 %v702, %v782
    %784 = vmatmul.bf16.gmra.mxu0 %v675
    %v785 = vpop.f32.mrf.mxu0
    %v786 = vadd.f32 %v702, %v785
    %v787 = vpop.f32.mrf.mxu0
    %v788 = vadd.f32 %v702, %v787
    %789 = vmatmul.bf16.gmra.mxu0 %v676
    %v790 = vpop.f32.mrf.mxu0
    %v791 = vadd.f32 %v702, %v790
    %v792 = vpop.f32.mrf.mxu0
    %v793 = vadd.f32 %v702, %v792
    %794 = vmatmul.bf16.gmra.mxu0 %v677
    %v795 = vpop.f32.mrf.mxu0
    %v796 = vadd.f32 %v702, %v795
    %v797 = vpop.f32.mrf.mxu0
    %v798 = vadd.f32 %v702, %v797
    %799 = vmatmul.bf16.gmra.mxu0 %v678
    %v800 = vpop.f32.mrf.mxu0
    %v801 = vadd.f32 %v702, %v800
    %v802 = vpop.f32.mrf.mxu0
    %v803 = vadd.f32 %v702, %v802
    %804 = vmatmul.bf16.gmra.mxu0 %v679
    %v805 = vpop.f32.mrf.mxu0
    %v806 = vadd.f32 %v702, %v805
    %v807 = vpop.f32.mrf.mxu0
    %v808 = vadd.f32 %v702, %v807
    %809 = vmatmul.bf16.gmra.mxu0 %v680
    %v810 = vpop.f32.mrf.mxu0
    %v811 = vadd.f32 %v702, %v810
    %v812 = vpop.f32.mrf.mxu0
    %v813 = vadd.f32 %v702, %v812
    %814 = vmatmul.bf16.gmra.mxu0 %v681
    %v815 = vpop.f32.mrf.mxu0
    %v816 = vadd.f32 %v702, %v815
    %v817 = vpop.f32.mrf.mxu0
    %v818 = vadd.f32 %v702, %v817
    %819 = vmatmul.bf16.gmra.mxu0 %v682
    %v820 = vpop.f32.mrf.mxu0
    %v821 = vadd.f32 %v702, %v820
    %v822 = vpop.f32.mrf.mxu0
    %v823 = vadd.f32 %v702, %v822
    %824 = vmatmul.bf16.gmra.mxu0 %v683
    %v825 = vpop.f32.mrf.mxu0
    %v826 = vadd.f32 %v702, %v825
    %v827 = vpop.f32.mrf.mxu0
    %v828 = vadd.f32 %v702, %v827
    %829 = vmatmul.bf16.gmra.mxu0 %v684
    %v830 = vpop.f32.mrf.mxu0
    %v831 = vadd.f32 %v702, %v830
    %v832 = vpop.f32.mrf.mxu0
    %v833 = vadd.f32 %v702, %v832
    %834 = vmatmul.bf16.gmra.mxu0 %v685
    %v835 = vpop.f32.mrf.mxu0
    %v836 = vadd.f32 %v702, %v835
    %v837 = vpop.f32.mrf.mxu0
    %v838 = vadd.f32 %v702, %v837
    %839 = vdwg.mxu0
    %v840 = vmax.f32 %v761, 0.0
    %v841 = vmax.f32 %v763, 0.0
    %v842 = vmax.f32 %v766, 0.0
    %v843 = vmax.f32 %v768, 0.0
    %v844 = vmax.f32 %v771, 0.0
    %v845 = vmax.f32 %v773, 0.0
    %v846 = vmax.f32 %v776, 0.0
    %v847 = vmax.f32 %v778, 0.0
    %v848 = vmax.f32 %v781, 0.0
    %v849 = vmax.f32 %v783, 0.0
    %v850 = vmax.f32 %v786, 0.0
    %v851 = vmax.f32 %v788, 0.0
    %v852 = vmax.f32 %v791, 0.0
    %v853 = vmax.f32 %v793, 0.0
    %v854 = vmax.f32 %v796, 0.0
    %v855 = vmax.f32 %v798, 0.0
    %v856 = vmax.f32 %v801, 0.0
    %v857 = vmax.f32 %v803, 0.0
    %v858 = vmax.f32 %v806, 0.0
    %v859 = vmax.f32 %v808, 0.0
    %v860 = vmax.f32 %v811, 0.0
    %v861 = vmax.f32 %v813, 0.0
    %v862 = vmax.f32 %v816, 0.0
    %v863 = vmax.f32 %v818, 0.0
    %v864 = vmax.f32 %v821, 0.0
    %v865 = vmax.f32 %v823, 0.0
    %v866 = vmax.f32 %v826, 0.0
    %v867 = vmax.f32 %v828, 0.0
    %v868 = vmax.f32 %v831, 0.0
    %v869 = vmax.f32 %v833, 0.0
    %v870 = vmax.f32 %v836, 0.0
    %v871 = vmax.f32 %v838, 0.0
    %v872 = vpack.c.bf16 %v841, %v840
    %v873 = vpack.c.bf16 %v843, %v842
    %v874 = vpack.c.bf16 %v845, %v844
    %v875 = vpack.c.bf16 %v847, %v846
    %v876 = vpack.c.bf16 %v849, %v848
    %v877 = vpack.c.bf16 %v851, %v850
    %v878 = vpack.c.bf16 %v853, %v852
    %v879 = vpack.c.bf16 %v855, %v854
    %v880 = vpack.c.bf16 %v857, %v856
    %v881 = vpack.c.bf16 %v859, %v858
    %v882 = vpack.c.bf16 %v861, %v860
    %v883 = vpack.c.bf16 %v863, %v862
    %v884 = vpack.c.bf16 %v865, %v864
    %v885 = vpack.c.bf16 %v867, %v866
    %v886 = vpack.c.bf16 %v869, %v868
    %v887 = vpack.c.bf16 %v871, %v870
    %v888 = vld [vmem:[#allocation10] sm:$0xf]
    %v889 = vld [vmem:[#allocation10 + $0x4] sm:$0xf]
    %v890 = vld [vmem:[#allocation10 + $0x8] sm:$0xf]
    %v891 = vld [vmem:[#allocation10 + $0xc] sm:$0xf]
    %v892 = vld [vmem:[#allocation10 + $0x10] sm:$0xf]
    %v893 = vld [vmem:[#allocation10 + $0x14] sm:$0xf]
    %v894 = vld [vmem:[#allocation10 + $0x18] sm:$0xf]
    %v895 = vld [vmem:[#allocation10 + $0x1c] sm:$0xf]
    %v896 = vld [vmem:[#allocation10 + $0x20] sm:$0xf]
    %v897 = vld [vmem:[#allocation10 + $0x24] sm:$0xf]
    %v898 = vld [vmem:[#allocation10 + $0x28] sm:$0xf]
    %v899 = vld [vmem:[#allocation10 + $0x2c] sm:$0xf]
    %v900 = vld [vmem:[#allocation10 + $0x30] sm:$0xf]
    %v901 = vld [vmem:[#allocation10 + $0x34] sm:$0xf]
    %v902 = vld [vmem:[#allocation10 + $0x38] sm:$0xf]
    %v903 = vld [vmem:[#allocation10 + $0x3c] sm:$0xf]
    %v904 = vperm.slane %v153, 3
    %v921 = vunpack.c.l.b16 %v888
    %v922 = vunpack.c.l.b16 %v889
    %v923 = vunpack.c.l.b16 %v890
    %v924 = vunpack.c.l.b16 %v891
    %v925 = vunpack.c.l.b16 %v892
    %v926 = vunpack.c.l.b16 %v893
    %v927 = vunpack.c.l.b16 %v894
    %v928 = vunpack.c.l.b16 %v895
    %v929 = vunpack.c.l.b16 %v896
    %v930 = vunpack.c.l.b16 %v897
    %v931 = vunpack.c.l.b16 %v898
    %v932 = vunpack.c.l.b16 %v899
    %v933 = vunpack.c.l.b16 %v900
    %v934 = vunpack.c.l.b16 %v901
    %v935 = vunpack.c.l.b16 %v902
    %v936 = vunpack.c.l.b16 %v903
    %v937 = vpack.c.b16 %v922, %v921
    %v938 = vpack.c.b16 %v924, %v923
    %v939 = vpack.c.b16 %v926, %v925
    %v940 = vpack.c.b16 %v928, %v927
    %v941 = vpack.c.b16 %v930, %v929
    %v942 = vpack.c.b16 %v932, %v931
    %v943 = vpack.c.b16 %v934, %v933
    %v944 = vpack.c.b16 %v936, %v935
    %953 = vmatpush.bf16.msra.mxu0 %v944
    %954 = vmatpush.bf16.msra.mxu0 %v943
    %955 = vmatpush.bf16.msra.mxu0 %v942
    %956 = vmatpush.bf16.msra.mxu0 %v941
    %957 = vmatpush.bf16.msra.mxu0 %v940
    %958 = vmatpush.bf16.msra.mxu0 %v939
    %959 = vmatpush.bf16.msra.mxu0 %v938
    %960 = vmatpush.bf16.msra.mxu0 %v937
    %961 = vmatmul.bf16.gmra.mxu0 %v872
    %v962 = vpop.f32.mrf.mxu0
    %v963 = vadd.f32 %v904, %v962
    %v964 = vpop.f32.mrf.mxu0
    %v965 = vadd.f32 %v904, %v964
    %966 = vmatmul.bf16.gmra.mxu0 %v873
    %v967 = vpop.f32.mrf.mxu0
    %v968 = vadd.f32 %v904, %v967
    %v969 = vpop.f32.mrf.mxu0
    %v970 = vadd.f32 %v904, %v969
    %971 = vmatmul.bf16.gmra.mxu0 %v874
    %v972 = vpop.f32.mrf.mxu0
    %v973 = vadd.f32 %v904, %v972
    %v974 = vpop.f32.mrf.mxu0
    %v975 = vadd.f32 %v904, %v974
    %976 = vmatmul.bf16.gmra.mxu0 %v875
    %v977 = vpop.f32.mrf.mxu0
    %v978 = vadd.f32 %v904, %v977
    %v979 = vpop.f32.mrf.mxu0
    %v980 = vadd.f32 %v904, %v979
    %981 = vmatmul.bf16.gmra.mxu0 %v876
    %v982 = vpop.f32.mrf.mxu0
    %v983 = vadd.f32 %v904, %v982
    %v984 = vpop.f32.mrf.mxu0
    %v985 = vadd.f32 %v904, %v984
    %986 = vmatmul.bf16.gmra.mxu0 %v877
    %v987 = vpop.f32.mrf.mxu0
    %v988 = vadd.f32 %v904, %v987
    %v989 = vpop.f32.mrf.mxu0
    %v990 = vadd.f32 %v904, %v989
    %991 = vmatmul.bf16.gmra.mxu0 %v878
    %v992 = vpop.f32.mrf.mxu0
    %v993 = vadd.f32 %v904, %v992
    %v994 = vpop.f32.mrf.mxu0
    %v995 = vadd.f32 %v904, %v994
    %996 = vmatmul.bf16.gmra.mxu0 %v879
    %v997 = vpop.f32.mrf.mxu0
    %v998 = vadd.f32 %v904, %v997
    %v999 = vpop.f32.mrf.mxu0
    %v1000 = vadd.f32 %v904, %v999
    %1001 = vmatmul.bf16.gmra.mxu0 %v880
    %v1002 = vpop.f32.mrf.mxu0
    %v1003 = vadd.f32 %v904, %v1002
    %v1004 = vpop.f32.mrf.mxu0
    %v1005 = vadd.f32 %v904, %v1004
    %1006 = vmatmul.bf16.gmra.mxu0 %v881
    %v1007 = vpop.f32.mrf.mxu0
    %v1008 = vadd.f32 %v904, %v1007
    %v1009 = vpop.f32.mrf.mxu0
    %v1010 = vadd.f32 %v904, %v1009
    %1011 = vmatmul.bf16.gmra.mxu0 %v882
    %v1012 = vpop.f32.mrf.mxu0
    %v1013 = vadd.f32 %v904, %v1012
    %v1014 = vpop.f32.mrf.mxu0
    %v1015 = vadd.f32 %v904, %v1014
    %1016 = vmatmul.bf16.gmra.mxu0 %v883
    %v1017 = vpop.f32.mrf.mxu0
    %v1018 = vadd.f32 %v904, %v1017
    %v1019 = vpop.f32.mrf.mxu0
    %v1020 = vadd.f32 %v904, %v1019
    %1021 = vmatmul.bf16.gmra.mxu0 %v884
    %v1022 = vpop.f32.mrf.mxu0
    %v1023 = vadd.f32 %v904, %v1022
    %v1024 = vpop.f32.mrf.mxu0
    %v1025 = vadd.f32 %v904, %v1024
    %1026 = vmatmul.bf16.gmra.mxu0 %v885
    %v1027 = vpop.f32.mrf.mxu0
    %v1028 = vadd.f32 %v904, %v1027
    %v1029 = vpop.f32.mrf.mxu0
    %v1030 = vadd.f32 %v904, %v1029
    %1031 = vmatmul.bf16.gmra.mxu0 %v886
    %v1032 = vpop.f32.mrf.mxu0
    %v1033 = vadd.f32 %v904, %v1032
    %v1034 = vpop.f32.mrf.mxu0
    %v1035 = vadd.f32 %v904, %v1034
    %1036 = vmatmul.bf16.gmra.mxu0 %v887
    %v1037 = vpop.f32.mrf.mxu0
    %v1038 = vadd.f32 %v904, %v1037
    %v1039 = vpop.f32.mrf.mxu0
    %v1040 = vadd.f32 %v904, %v1039
    %1041 = vdwg.mxu0
    %v1042 = vmax.f32 %v963, 0.0
    %v1043 = vmax.f32 %v965, 0.0
    %v1044 = vmax.f32 %v968, 0.0
    %v1045 = vmax.f32 %v970, 0.0
    %v1046 = vmax.f32 %v973, 0.0
    %v1047 = vmax.f32 %v975, 0.0
    %v1048 = vmax.f32 %v978, 0.0
    %v1049 = vmax.f32 %v980, 0.0
    %v1050 = vmax.f32 %v983, 0.0
    %v1051 = vmax.f32 %v985, 0.0
    %v1052 = vmax.f32 %v988, 0.0
    %v1053 = vmax.f32 %v990, 0.0
    %v1054 = vmax.f32 %v993, 0.0
    %v1055 = vmax.f32 %v995, 0.0
    %v1056 = vmax.f32 %v998, 0.0
    %v1057 = vmax.f32 %v1000, 0.0
    %v1058 = vmax.f32 %v1003, 0.0
    %v1059 = vmax.f32 %v1005, 0.0
    %v1060 = vmax.f32 %v1008, 0.0
    %v1061 = vmax.f32 %v1010, 0.0
    %v1062 = vmax.f32 %v1013, 0.0
    %v1063 = vmax.f32 %v1015, 0.0
    %v1064 = vmax.f32 %v1018, 0.0
    %v1065 = vmax.f32 %v1020, 0.0
    %v1066 = vmax.f32 %v1023, 0.0
    %v1067 = vmax.f32 %v1025, 0.0
    %v1068 = vmax.f32 %v1028, 0.0
    %v1069 = vmax.f32 %v1030, 0.0
    %v1070 = vmax.f32 %v1033, 0.0
    %v1071 = vmax.f32 %v1035, 0.0
    %v1072 = vmax.f32 %v1038, 0.0
    %v1073 = vmax.f32 %v1040, 0.0
    %v1074 = vpack.c.bf16 %v1043, %v1042
    %v1075 = vpack.c.bf16 %v1045, %v1044
    %v1076 = vpack.c.bf16 %v1047, %v1046
    %v1077 = vpack.c.bf16 %v1049, %v1048
    %v1078 = vpack.c.bf16 %v1051, %v1050
    %v1079 = vpack.c.bf16 %v1053, %v1052
    %v1080 = vpack.c.bf16 %v1055, %v1054
    %v1081 = vpack.c.bf16 %v1057, %v1056
    %v1082 = vpack.c.bf16 %v1059, %v1058
    %v1083 = vpack.c.bf16 %v1061, %v1060
    %v1084 = vpack.c.bf16 %v1063, %v1062
    %v1085 = vpack.c.bf16 %v1065, %v1064
    %v1086 = vpack.c.bf16 %v1067, %v1066
    %v1087 = vpack.c.bf16 %v1069, %v1068
    %v1088 = vpack.c.bf16 %v1071, %v1070
    %v1089 = vpack.c.bf16 %v1073, %v1072
    %v1090 = vld [vmem:[#allocation11] sm:$0xf]
    %v1091 = vld [vmem:[#allocation11 + $0x4] sm:$0xf]
    %v1092 = vld [vmem:[#allocation11 + $0x8] sm:$0xf]
    %v1093 = vld [vmem:[#allocation11 + $0xc] sm:$0xf]
    %v1094 = vld [vmem:[#allocation11 + $0x10] sm:$0xf]
    %v1095 = vld [vmem:[#allocation11 + $0x14] sm:$0xf]
    %v1096 = vld [vmem:[#allocation11 + $0x18] sm:$0xf]
    %v1097 = vld [vmem:[#allocation11 + $0x1c] sm:$0xf]
    %v1098 = vld [vmem:[#allocation11 + $0x20] sm:$0xf]
    %v1099 = vld [vmem:[#allocation11 + $0x24] sm:$0xf]
    %v1100 = vld [vmem:[#allocation11 + $0x28] sm:$0xf]
    %v1101 = vld [vmem:[#allocation11 + $0x2c] sm:$0xf]
    %v1102 = vld [vmem:[#allocation11 + $0x30] sm:$0xf]
    %v1103 = vld [vmem:[#allocation11 + $0x34] sm:$0xf]
    %v1104 = vld [vmem:[#allocation11 + $0x38] sm:$0xf]
    %v1105 = vld [vmem:[#allocation11 + $0x3c] sm:$0xf]
    %v1106 = vperm.slane %v153, 4
    %v1123 = vunpack.c.l.b16 %v1090
    %v1124 = vunpack.c.l.b16 %v1091
    %v1125 = vunpack.c.l.b16 %v1092
    %v1126 = vunpack.c.l.b16 %v1093
    %v1127 = vunpack.c.l.b16 %v1094
    %v1128 = vunpack.c.l.b16 %v1095
    %v1129 = vunpack.c.l.b16 %v1096
    %v1130 = vunpack.c.l.b16 %v1097
    %v1131 = vunpack.c.l.b16 %v1098
    %v1132 = vunpack.c.l.b16 %v1099
    %v1133 = vunpack.c.l.b16 %v1100
    %v1134 = vunpack.c.l.b16 %v1101
    %v1135 = vunpack.c.l.b16 %v1102
    %v1136 = vunpack.c.l.b16 %v1103
    %v1137 = vunpack.c.l.b16 %v1104
    %v1138 = vunpack.c.l.b16 %v1105
    %v1139 = vpack.c.b16 %v1124, %v1123
    %v1140 = vpack.c.b16 %v1126, %v1125
    %v1141 = vpack.c.b16 %v1128, %v1127
    %v1142 = vpack.c.b16 %v1130, %v1129
    %v1143 = vpack.c.b16 %v1132, %v1131
    %v1144 = vpack.c.b16 %v1134, %v1133
    %v1145 = vpack.c.b16 %v1136, %v1135
    %v1146 = vpack.c.b16 %v1138, %v1137
    %1155 = vmatpush.bf16.msra.mxu0 %v1146
    %1156 = vmatpush.bf16.msra.mxu0 %v1145
    %1157 = vmatpush.bf16.msra.mxu0 %v1144
    %1158 = vmatpush.bf16.msra.mxu0 %v1143
    %1159 = vmatpush.bf16.msra.mxu0 %v1142
    %1160 = vmatpush.bf16.msra.mxu0 %v1141
    %1161 = vmatpush.bf16.msra.mxu0 %v1140
    %1162 = vmatpush.bf16.msra.mxu0 %v1139
    %1163 = vmatmul.bf16.gmra.mxu0 %v1074
    %v1164 = vpop.f32.mrf.mxu0
    %v1165 = vadd.f32 %v1106, %v1164
    %v1166 = vpop.f32.mrf.mxu0
    %v1167 = vadd.f32 %v1106, %v1166
    %1168 = vmatmul.bf16.gmra.mxu0 %v1075
    %v1169 = vpop.f32.mrf.mxu0
    %v1170 = vadd.f32 %v1106, %v1169
    %v1171 = vpop.f32.mrf.mxu0
    %v1172 = vadd.f32 %v1106, %v1171
    %1173 = vmatmul.bf16.gmra.mxu0 %v1076
    %v1174 = vpop.f32.mrf.mxu0
    %v1175 = vadd.f32 %v1106, %v1174
    %v1176 = vpop.f32.mrf.mxu0
    %v1177 = vadd.f32 %v1106, %v1176
    %1178 = vmatmul.bf16.gmra.mxu0 %v1077
    %v1179 = vpop.f32.mrf.mxu0
    %v1180 = vadd.f32 %v1106, %v1179
    %v1181 = vpop.f32.mrf.mxu0
    %v1182 = vadd.f32 %v1106, %v1181
    %1183 = vmatmul.bf16.gmra.mxu0 %v1078
    %v1184 = vpop.f32.mrf.mxu0
    %v1185 = vadd.f32 %v1106, %v1184
    %v1186 = vpop.f32.mrf.mxu0
    %v1187 = vadd.f32 %v1106, %v1186
    %1188 = vmatmul.bf16.gmra.mxu0 %v1079
    %v1189 = vpop.f32.mrf.mxu0
    %v1190 = vadd.f32 %v1106, %v1189
    %v1191 = vpop.f32.mrf.mxu0
    %v1192 = vadd.f32 %v1106, %v1191
    %1193 = vmatmul.bf16.gmra.mxu0 %v1080
    %v1194 = vpop.f32.mrf.mxu0
    %v1195 = vadd.f32 %v1106, %v1194
    %v1196 = vpop.f32.mrf.mxu0
    %v1197 = vadd.f32 %v1106, %v1196
    %1198 = vmatmul.bf16.gmra.mxu0 %v1081
    %v1199 = vpop.f32.mrf.mxu0
    %v1200 = vadd.f32 %v1106, %v1199
    %v1201 = vpop.f32.mrf.mxu0
    %v1202 = vadd.f32 %v1106, %v1201
    %1203 = vmatmul.bf16.gmra.mxu0 %v1082
    %v1204 = vpop.f32.mrf.mxu0
    %v1205 = vadd.f32 %v1106, %v1204
    %v1206 = vpop.f32.mrf.mxu0
    %v1207 = vadd.f32 %v1106, %v1206
    %1208 = vmatmul.bf16.gmra.mxu0 %v1083
    %v1209 = vpop.f32.mrf.mxu0
    %v1210 = vadd.f32 %v1106, %v1209
    %v1211 = vpop.f32.mrf.mxu0
    %v1212 = vadd.f32 %v1106, %v1211
    %1213 = vmatmul.bf16.gmra.mxu0 %v1084
    %v1214 = vpop.f32.mrf.mxu0
    %v1215 = vadd.f32 %v1106, %v1214
    %v1216 = vpop.f32.mrf.mxu0
    %v1217 = vadd.f32 %v1106, %v1216
    %1218 = vmatmul.bf16.gmra.mxu0 %v1085
    %v1219 = vpop.f32.mrf.mxu0
    %v1220 = vadd.f32 %v1106, %v1219
    %v1221 = vpop.f32.mrf.mxu0
    %v1222 = vadd.f32 %v1106, %v1221
    %1223 = vmatmul.bf16.gmra.mxu0 %v1086
    %v1224 = vpop.f32.mrf.mxu0
    %v1225 = vadd.f32 %v1106, %v1224
    %v1226 = vpop.f32.mrf.mxu0
    %v1227 = vadd.f32 %v1106, %v1226
    %1228 = vmatmul.bf16.gmra.mxu0 %v1087
    %v1229 = vpop.f32.mrf.mxu0
    %v1230 = vadd.f32 %v1106, %v1229
    %v1231 = vpop.f32.mrf.mxu0
    %v1232 = vadd.f32 %v1106, %v1231
    %1233 = vmatmul.bf16.gmra.mxu0 %v1088
    %v1234 = vpop.f32.mrf.mxu0
    %v1235 = vadd.f32 %v1106, %v1234
    %v1236 = vpop.f32.mrf.mxu0
    %v1237 = vadd.f32 %v1106, %v1236
    %1238 = vmatmul.bf16.gmra.mxu0 %v1089
    %v1239 = vpop.f32.mrf.mxu0
    %v1240 = vadd.f32 %v1106, %v1239
    %v1241 = vpop.f32.mrf.mxu0
    %v1242 = vadd.f32 %v1106, %v1241
    %1243 = vdwg.mxu0
    %v1244 = vmax.f32 %v1165, 0.0
    %v1245 = vmax.f32 %v1167, 0.0
    %v1246 = vmax.f32 %v1170, 0.0
    %v1247 = vmax.f32 %v1172, 0.0
    %v1248 = vmax.f32 %v1175, 0.0
    %v1249 = vmax.f32 %v1177, 0.0
    %v1250 = vmax.f32 %v1180, 0.0
    %v1251 = vmax.f32 %v1182, 0.0
    %v1252 = vmax.f32 %v1185, 0.0
    %v1253 = vmax.f32 %v1187, 0.0
    %v1254 = vmax.f32 %v1190, 0.0
    %v1255 = vmax.f32 %v1192, 0.0
    %v1256 = vmax.f32 %v1195, 0.0
    %v1257 = vmax.f32 %v1197, 0.0
    %v1258 = vmax.f32 %v1200, 0.0
    %v1259 = vmax.f32 %v1202, 0.0
    %v1260 = vmax.f32 %v1205, 0.0
    %v1261 = vmax.f32 %v1207, 0.0
    %v1262 = vmax.f32 %v1210, 0.0
    %v1263 = vmax.f32 %v1212, 0.0
    %v1264 = vmax.f32 %v1215, 0.0
    %v1265 = vmax.f32 %v1217, 0.0
    %v1266 = vmax.f32 %v1220, 0.0
    %v1267 = vmax.f32 %v1222, 0.0
    %v1268 = vmax.f32 %v1225, 0.0
    %v1269 = vmax.f32 %v1227, 0.0
    %v1270 = vmax.f32 %v1230, 0.0
    %v1271 = vmax.f32 %v1232, 0.0
    %v1272 = vmax.f32 %v1235, 0.0
    %v1273 = vmax.f32 %v1237, 0.0
    %v1274 = vmax.f32 %v1240, 0.0
    %v1275 = vmax.f32 %v1242, 0.0
    %v1276 = vpack.c.bf16 %v1245, %v1244
    %v1277 = vpack.c.bf16 %v1247, %v1246
    %v1278 = vpack.c.bf16 %v1249, %v1248
    %v1279 = vpack.c.bf16 %v1251, %v1250
    %v1280 = vpack.c.bf16 %v1253, %v1252
    %v1281 = vpack.c.bf16 %v1255, %v1254
    %v1282 = vpack.c.bf16 %v1257, %v1256
    %v1283 = vpack.c.bf16 %v1259, %v1258
    %v1284 = vpack.c.bf16 %v1261, %v1260
    %v1285 = vpack.c.bf16 %v1263, %v1262
    %v1286 = vpack.c.bf16 %v1265, %v1264
    %v1287 = vpack.c.bf16 %v1267, %v1266
    %v1288 = vpack.c.bf16 %v1269, %v1268
    %v1289 = vpack.c.bf16 %v1271, %v1270
    %v1290 = vpack.c.bf16 %v1273, %v1272
    %v1291 = vpack.c.bf16 %v1275, %v1274
    %v1292 = vld [vmem:[#allocation13] sm:$0xf]
    %v1293 = vld [vmem:[#allocation13 + $0x4] sm:$0xf]
    %v1294 = vld [vmem:[#allocation13 + $0x8] sm:$0xf]
    %v1295 = vld [vmem:[#allocation13 + $0xc] sm:$0xf]
    %v1296 = vld [vmem:[#allocation13 + $0x10] sm:$0xf]
    %v1297 = vld [vmem:[#allocation13 + $0x14] sm:$0xf]
    %v1298 = vld [vmem:[#allocation13 + $0x18] sm:$0xf]
    %v1299 = vld [vmem:[#allocation13 + $0x1c] sm:$0xf]
    %v1300 = vld [vmem:[#allocation13 + $0x20] sm:$0xf]
    %v1301 = vld [vmem:[#allocation13 + $0x24] sm:$0xf]
    %v1302 = vld [vmem:[#allocation13 + $0x28] sm:$0xf]
    %v1303 = vld [vmem:[#allocation13 + $0x2c] sm:$0xf]
    %v1304 = vld [vmem:[#allocation13 + $0x30] sm:$0xf]
    %v1305 = vld [vmem:[#allocation13 + $0x34] sm:$0xf]
    %v1306 = vld [vmem:[#allocation13 + $0x38] sm:$0xf]
    %v1307 = vld [vmem:[#allocation13 + $0x3c] sm:$0xf]
    %v1308 = vperm.slane %v153, 5
    %v1325 = vunpack.c.l.b16 %v1292
    %v1326 = vunpack.c.l.b16 %v1293
    %v1327 = vunpack.c.l.b16 %v1294
    %v1328 = vunpack.c.l.b16 %v1295
    %v1329 = vunpack.c.l.b16 %v1296
    %v1330 = vunpack.c.l.b16 %v1297
    %v1331 = vunpack.c.l.b16 %v1298
    %v1332 = vunpack.c.l.b16 %v1299
    %v1333 = vunpack.c.l.b16 %v1300
    %v1334 = vunpack.c.l.b16 %v1301
    %v1335 = vunpack.c.l.b16 %v1302
    %v1336 = vunpack.c.l.b16 %v1303
    %v1337 = vunpack.c.l.b16 %v1304
    %v1338 = vunpack.c.l.b16 %v1305
    %v1339 = vunpack.c.l.b16 %v1306
    %v1340 = vunpack.c.l.b16 %v1307
    %v1341 = vpack.c.b16 %v1326, %v1325
    %v1342 = vpack.c.b16 %v1328, %v1327
    %v1343 = vpack.c.b16 %v1330, %v1329
    %v1344 = vpack.c.b16 %v1332, %v1331
    %v1345 = vpack.c.b16 %v1334, %v1333
    %v1346 = vpack.c.b16 %v1336, %v1335
    %v1347 = vpack.c.b16 %v1338, %v1337
    %v1348 = vpack.c.b16 %v1340, %v1339
    %1357 = vmatpush.bf16.msra.mxu0 %v1348
    %1358 = vmatpush.bf16.msra.mxu0 %v1347
    %1359 = vmatpush.bf16.msra.mxu0 %v1346
    %1360 = vmatpush.bf16.msra.mxu0 %v1345
    %1361 = vmatpush.bf16.msra.mxu0 %v1344
    %1362 = vmatpush.bf16.msra.mxu0 %v1343
    %1363 = vmatpush.bf16.msra.mxu0 %v1342
    %1364 = vmatpush.bf16.msra.mxu0 %v1341
    %1365 = vmatmul.bf16.gmra.mxu0 %v1276
    %v1366 = vpop.f32.mrf.mxu0
    %v1367 = vadd.f32 %v1308, %v1366
    %v1368 = vpop.f32.mrf.mxu0
    %v1369 = vadd.f32 %v1308, %v1368
    %1370 = vmatmul.bf16.gmra.mxu0 %v1277
    %v1371 = vpop.f32.mrf.mxu0
    %v1372 = vadd.f32 %v1308, %v1371
    %v1373 = vpop.f32.mrf.mxu0
    %v1374 = vadd.f32 %v1308, %v1373
    %1375 = vmatmul.bf16.gmra.mxu0 %v1278
    %v1376 = vpop.f32.mrf.mxu0
    %v1377 = vadd.f32 %v1308, %v1376
    %v1378 = vpop.f32.mrf.mxu0
    %v1379 = vadd.f32 %v1308, %v1378
    %1380 = vmatmul.bf16.gmra.mxu0 %v1279
    %v1381 = vpop.f32.mrf.mxu0
    %v1382 = vadd.f32 %v1308, %v1381
    %v1383 = vpop.f32.mrf.mxu0
    %v1384 = vadd.f32 %v1308, %v1383
    %1385 = vmatmul.bf16.gmra.mxu0 %v1280
    %v1386 = vpop.f32.mrf.mxu0
    %v1387 = vadd.f32 %v1308, %v1386
    %v1388 = vpop.f32.mrf.mxu0
    %v1389 = vadd.f32 %v1308, %v1388
    %1390 = vmatmul.bf16.gmra.mxu0 %v1281
    %v1391 = vpop.f32.mrf.mxu0
    %v1392 = vadd.f32 %v1308, %v1391
    %v1393 = vpop.f32.mrf.mxu0
    %v1394 = vadd.f32 %v1308, %v1393
    %1395 = vmatmul.bf16.gmra.mxu0 %v1282
    %v1396 = vpop.f32.mrf.mxu0
    %v1397 = vadd.f32 %v1308, %v1396
    %v1398 = vpop.f32.mrf.mxu0
    %v1399 = vadd.f32 %v1308, %v1398
    %1400 = vmatmul.bf16.gmra.mxu0 %v1283
    %v1401 = vpop.f32.mrf.mxu0
    %v1402 = vadd.f32 %v1308, %v1401
    %v1403 = vpop.f32.mrf.mxu0
    %v1404 = vadd.f32 %v1308, %v1403
    %1405 = vmatmul.bf16.gmra.mxu0 %v1284
    %v1406 = vpop.f32.mrf.mxu0
    %v1407 = vadd.f32 %v1308, %v1406
    %v1408 = vpop.f32.mrf.mxu0
    %v1409 = vadd.f32 %v1308, %v1408
    %1410 = vmatmul.bf16.gmra.mxu0 %v1285
    %v1411 = vpop.f32.mrf.mxu0
    %v1412 = vadd.f32 %v1308, %v1411
    %v1413 = vpop.f32.mrf.mxu0
    %v1414 = vadd.f32 %v1308, %v1413
    %1415 = vmatmul.bf16.gmra.mxu0 %v1286
    %v1416 = vpop.f32.mrf.mxu0
    %v1417 = vadd.f32 %v1308, %v1416
    %v1418 = vpop.f32.mrf.mxu0
    %v1419 = vadd.f32 %v1308, %v1418
    %1420 = vmatmul.bf16.gmra.mxu0 %v1287
    %v1421 = vpop.f32.mrf.mxu0
    %v1422 = vadd.f32 %v1308, %v1421
    %v1423 = vpop.f32.mrf.mxu0
    %v1424 = vadd.f32 %v1308, %v1423
    %1425 = vmatmul.bf16.gmra.mxu0 %v1288
    %v1426 = vpop.f32.mrf.mxu0
    %v1427 = vadd.f32 %v1308, %v1426
    %v1428 = vpop.f32.mrf.mxu0
    %v1429 = vadd.f32 %v1308, %v1428
    %1430 = vmatmul.bf16.gmra.mxu0 %v1289
    %v1431 = vpop.f32.mrf.mxu0
    %v1432 = vadd.f32 %v1308, %v1431
    %v1433 = vpop.f32.mrf.mxu0
    %v1434 = vadd.f32 %v1308, %v1433
    %1435 = vmatmul.bf16.gmra.mxu0 %v1290
    %v1436 = vpop.f32.mrf.mxu0
    %v1437 = vadd.f32 %v1308, %v1436
    %v1438 = vpop.f32.mrf.mxu0
    %v1439 = vadd.f32 %v1308, %v1438
    %1440 = vmatmul.bf16.gmra.mxu0 %v1291
    %v1441 = vpop.f32.mrf.mxu0
    %v1442 = vadd.f32 %v1308, %v1441
    %v1443 = vpop.f32.mrf.mxu0
    %v1444 = vadd.f32 %v1308, %v1443
    %1445 = vdwg.mxu0
    %v1446 = vand.u32 2147483647, %v1367
    %v1447 = vand.u32 2147483647, %v1369
    %v1448 = vand.u32 2147483647, %v1372
    %v1449 = vand.u32 2147483647, %v1374
    %v1450 = vand.u32 2147483647, %v1377
    %v1451 = vand.u32 2147483647, %v1379
    %v1452 = vand.u32 2147483647, %v1382
    %v1453 = vand.u32 2147483647, %v1384
    %v1454 = vand.u32 2147483647, %v1387
    %v1455 = vand.u32 2147483647, %v1389
    %v1456 = vand.u32 2147483647, %v1392
    %v1457 = vand.u32 2147483647, %v1394
    %v1458 = vand.u32 2147483647, %v1397
    %v1459 = vand.u32 2147483647, %v1399
    %v1460 = vand.u32 2147483647, %v1402
    %v1461 = vand.u32 2147483647, %v1404
    %v1462 = vand.u32 2147483647, %v1407
    %v1463 = vand.u32 2147483647, %v1409
    %v1464 = vand.u32 2147483647, %v1412
    %v1465 = vand.u32 2147483647, %v1414
    %v1466 = vand.u32 2147483647, %v1417
    %v1467 = vand.u32 2147483647, %v1419
    %v1468 = vand.u32 2147483647, %v1422
    %v1469 = vand.u32 2147483647, %v1424
    %v1470 = vand.u32 2147483647, %v1427
    %v1471 = vand.u32 2147483647, %v1429
    %v1472 = vand.u32 2147483647, %v1432
    %v1473 = vand.u32 2147483647, %v1434
    %v1474 = vand.u32 2147483647, %v1437
    %v1475 = vand.u32 2147483647, %v1439
    %v1476 = vand.u32 2147483647, %v1442
    %v1477 = vand.u32 2147483647, %v1444
    %v1478 = vsub.f32 0.0, %v1446
    %v1479 = vsub.f32 0.0, %v1447
    %v1480 = vsub.f32 0.0, %v1448
    %v1481 = vsub.f32 0.0, %v1449
    %v1482 = vsub.f32 0.0, %v1450
    %v1483 = vsub.f32 0.0, %v1451
    %v1484 = vsub.f32 0.0, %v1452
    %v1485 = vsub.f32 0.0, %v1453
    %v1486 = vsub.f32 0.0, %v1454
    %v1487 = vsub.f32 0.0, %v1455
    %v1488 = vsub.f32 0.0, %v1456
    %v1489 = vsub.f32 0.0, %v1457
    %v1490 = vsub.f32 0.0, %v1458
    %v1491 = vsub.f32 0.0, %v1459
    %v1492 = vsub.f32 0.0, %v1460
    %v1493 = vsub.f32 0.0, %v1461
    %v1494 = vsub.f32 0.0, %v1462
    %v1495 = vsub.f32 0.0, %v1463
    %v1496 = vsub.f32 0.0, %v1464
    %v1497 = vsub.f32 0.0, %v1465
    %v1498 = vsub.f32 0.0, %v1466
    %v1499 = vsub.f32 0.0, %v1467
    %v1500 = vsub.f32 0.0, %v1468
    %v1501 = vsub.f32 0.0, %v1469
    %v1502 = vsub.f32 0.0, %v1470
    %v1503 = vsub.f32 0.0, %v1471
    %v1504 = vsub.f32 0.0, %v1472
    %v1505 = vsub.f32 0.0, %v1473
    %v1506 = vsub.f32 0.0, %v1474
    %v1507 = vsub.f32 0.0, %v1475
    %v1508 = vsub.f32 0.0, %v1476
    %v1509 = vsub.f32 0.0, %v1477
    %v1510 = vmul.f32 %v1478, 1.442695
    %v1511 = vpow.pop %v1510
    %v1512 = vmul.f32 %v1479, 1.442695
    %v1513 = vpow.pop %v1512
    %v1514 = vmul.f32 %v1480, 1.442695
    %v1515 = vpow.pop %v1514
    %v1516 = vmul.f32 %v1481, 1.442695
    %v1517 = vpow.pop %v1516
    %v1518 = vmul.f32 %v1482, 1.442695
    %v1519 = vpow.pop %v1518
    %v1520 = vmul.f32 %v1483, 1.442695
    %v1521 = vpow.pop %v1520
    %v1522 = vmul.f32 %v1484, 1.442695
    %v1523 = vpow.pop %v1522
    %v1524 = vmul.f32 %v1485, 1.442695
    %v1525 = vpow.pop %v1524
    %v1526 = vmul.f32 %v1486, 1.442695
    %v1527 = vpow.pop %v1526
    %v1528 = vmul.f32 %v1487, 1.442695
    %v1529 = vpow.pop %v1528
    %v1530 = vmul.f32 %v1488, 1.442695
    %v1531 = vpow.pop %v1530
    %v1532 = vmul.f32 %v1489, 1.442695
    %v1533 = vpow.pop %v1532
    %v1534 = vmul.f32 %v1490, 1.442695
    %v1535 = vpow.pop %v1534
    %v1536 = vmul.f32 %v1491, 1.442695
    %v1537 = vpow.pop %v1536
    %v1538 = vmul.f32 %v1492, 1.442695
    %v1539 = vpow.pop %v1538
    %v1540 = vmul.f32 %v1493, 1.442695
    %v1541 = vpow.pop %v1540
    %v1542 = vmul.f32 %v1494, 1.442695
    %v1543 = vpow.pop %v1542
    %v1544 = vmul.f32 %v1495, 1.442695
    %v1545 = vpow.pop %v1544
    %v1546 = vmul.f32 %v1496, 1.442695
    %v1547 = vpow.pop %v1546
    %v1548 = vmul.f32 %v1497, 1.442695
    %v1549 = vpow.pop %v1548
    %v1550 = vmul.f32 %v1498, 1.442695
    %v1551 = vpow.pop %v1550
    %v1552 = vmul.f32 %v1499, 1.442695
    %v1553 = vpow.pop %v1552
    %v1554 = vmul.f32 %v1500, 1.442695
    %v1555 = vpow.pop %v1554
    %v1556 = vmul.f32 %v1501, 1.442695
    %v1557 = vpow.pop %v1556
    %v1558 = vmul.f32 %v1502, 1.442695
    %v1559 = vpow.pop %v1558
    %v1560 = vmul.f32 %v1503, 1.442695
    %v1561 = vpow.pop %v1560
    %v1562 = vmul.f32 %v1504, 1.442695
    %v1563 = vpow.pop %v1562
    %v1564 = vmul.f32 %v1505, 1.442695
    %v1565 = vpow.pop %v1564
    %v1566 = vmul.f32 %v1506, 1.442695
    %v1567 = vpow.pop %v1566
    %v1568 = vmul.f32 %v1507, 1.442695
    %v1569 = vpow.pop %v1568
    %v1570 = vmul.f32 %v1508, 1.442695
    %v1571 = vpow.pop %v1570
    %v1572 = vmul.f32 %v1509, 1.442695
    %v1573 = vpow.pop %v1572
    %v1574 = vadd.f32 %v1511, 1.0
    %v1575 = vadd.f32 %v1513, 1.0
    %v1576 = vadd.f32 %v1515, 1.0
    %v1577 = vadd.f32 %v1517, 1.0
    %v1578 = vadd.f32 %v1519, 1.0
    %v1579 = vadd.f32 %v1521, 1.0
    %v1580 = vadd.f32 %v1523, 1.0
    %v1581 = vadd.f32 %v1525, 1.0
    %v1582 = vadd.f32 %v1527, 1.0
    %v1583 = vadd.f32 %v1529, 1.0
    %v1584 = vadd.f32 %v1531, 1.0
    %v1585 = vadd.f32 %v1533, 1.0
    %v1586 = vadd.f32 %v1535, 1.0
    %v1587 = vadd.f32 %v1537, 1.0
    %v1588 = vadd.f32 %v1539, 1.0
    %v1589 = vadd.f32 %v1541, 1.0
    %v1590 = vadd.f32 %v1543, 1.0
    %v1591 = vadd.f32 %v1545, 1.0
    %v1592 = vadd.f32 %v1547, 1.0
    %v1593 = vadd.f32 %v1549, 1.0
    %v1594 = vadd.f32 %v1551, 1.0
    %v1595 = vadd.f32 %v1553, 1.0
    %v1596 = vadd.f32 %v1555, 1.0
    %v1597 = vadd.f32 %v1557, 1.0
    %v1598 = vadd.f32 %v1559, 1.0
    %v1599 = vadd.f32 %v1561, 1.0
    %v1600 = vadd.f32 %v1563, 1.0
    %v1601 = vadd.f32 %v1565, 1.0
    %v1602 = vadd.f32 %v1567, 1.0
    %v1603 = vadd.f32 %v1569, 1.0
    %v1604 = vadd.f32 %v1571, 1.0
    %v1605 = vadd.f32 %v1573, 1.0
    %v1606 = vrcp.pop %v1574
    %v1607 = vmul.f32 %v1574, %v1606
    %v1608 = vsub.f32 1.0, %v1607
    %v1609 = vmul.f32 %v1606, %v1608
    %v1610 = vadd.f32 %v1606, %v1609
    %vm1611 = vweird.f32 %v1574
    %vm1612 = vweird.f32 %v1606
    %vm1613 = vmor %vm1611, %vm1612
    %v1614 = vsel %vm1613, %v1606, %v1610
    %v1615 = vand.u32 2147483647, %v1574
    %vm1616 = vcmp.eq.f32.partialorder %v1615, 8.507059e+37
    %v1617 = vand.u32 %v1574, 2147483648
    %v1618 = vor.u32 1.1754944e-38, %v1617
    %v1619 = vsel %vm1616, %v1618, %v1614
    %v1620 = vmul.f32 1.0, %v1619
    %v1621 = vrcp.pop %v1575
    %v1622 = vmul.f32 %v1575, %v1621
    %v1623 = vsub.f32 1.0, %v1622
    %v1624 = vmul.f32 %v1621, %v1623
    %v1625 = vadd.f32 %v1621, %v1624
    %vm1626 = vweird.f32 %v1575
    %vm1627 = vweird.f32 %v1621
    %vm1628 = vmor %vm1626, %vm1627
    %v1629 = vsel %vm1628, %v1621, %v1625
    %v1630 = vand.u32 2147483647, %v1575
    %vm1631 = vcmp.eq.f32.partialorder %v1630, 8.507059e+37
    %v1632 = vand.u32 %v1575, 2147483648
    %v1633 = vor.u32 1.1754944e-38, %v1632
    %v1634 = vsel %vm1631, %v1633, %v1629
    %v1635 = vmul.f32 1.0, %v1634
    %v1636 = vrcp.pop %v1576
    %v1637 = vmul.f32 %v1576, %v1636
    %v1638 = vsub.f32 1.0, %v1637
    %v1639 = vmul.f32 %v1636, %v1638
    %v1640 = vadd.f32 %v1636, %v1639
    %vm1641 = vweird.f32 %v1576
    %vm1642 = vweird.f32 %v1636
    %vm1643 = vmor %vm1641, %vm1642
    %v1644 = vsel %vm1643, %v1636, %v1640
    %v1645 = vand.u32 2147483647, %v1576
    %vm1646 = vcmp.eq.f32.partialorder %v1645, 8.507059e+37
    %v1647 = vand.u32 %v1576, 2147483648
    %v1648 = vor.u32 1.1754944e-38, %v1647
    %v1649 = vsel %vm1646, %v1648, %v1644
    %v1650 = vmul.f32 1.0, %v1649
    %v1651 = vrcp.pop %v1577
    %v1652 = vmul.f32 %v1577, %v1651
    %v1653 = vsub.f32 1.0, %v1652
    %v1654 = vmul.f32 %v1651, %v1653
    %v1655 = vadd.f32 %v1651, %v1654
    %vm1656 = vweird.f32 %v1577
    %vm1657 = vweird.f32 %v1651
    %vm1658 = vmor %vm1656, %vm1657
    %v1659 = vsel %vm1658, %v1651, %v1655
    %v1660 = vand.u32 2147483647, %v1577
    %vm1661 = vcmp.eq.f32.partialorder %v1660, 8.507059e+37
    %v1662 = vand.u32 %v1577, 2147483648
    %v1663 = vor.u32 1.1754944e-38, %v1662
    %v1664 = vsel %vm1661, %v1663, %v1659
    %v1665 = vmul.f32 1.0, %v1664
    %v1666 = vrcp.pop %v1578
    %v1667 = vmul.f32 %v1578, %v1666
    %v1668 = vsub.f32 1.0, %v1667
    %v1669 = vmul.f32 %v1666, %v1668
    %v1670 = vadd.f32 %v1666, %v1669
    %vm1671 = vweird.f32 %v1578
    %vm1672 = vweird.f32 %v1666
    %vm1673 = vmor %vm1671, %vm1672
    %v1674 = vsel %vm1673, %v1666, %v1670
    %v1675 = vand.u32 2147483647, %v1578
    %vm1676 = vcmp.eq.f32.partialorder %v1675, 8.507059e+37
    %v1677 = vand.u32 %v1578, 2147483648
    %v1678 = vor.u32 1.1754944e-38, %v1677
    %v1679 = vsel %vm1676, %v1678, %v1674
    %v1680 = vmul.f32 1.0, %v1679
    %v1681 = vrcp.pop %v1579
    %v1682 = vmul.f32 %v1579, %v1681
    %v1683 = vsub.f32 1.0, %v1682
    %v1684 = vmul.f32 %v1681, %v1683
    %v1685 = vadd.f32 %v1681, %v1684
    %vm1686 = vweird.f32 %v1579
    %vm1687 = vweird.f32 %v1681
    %vm1688 = vmor %vm1686, %vm1687
    %v1689 = vsel %vm1688, %v1681, %v1685
    %v1690 = vand.u32 2147483647, %v1579
    %vm1691 = vcmp.eq.f32.partialorder %v1690, 8.507059e+37
    %v1692 = vand.u32 %v1579, 2147483648
    %v1693 = vor.u32 1.1754944e-38, %v1692
    %v1694 = vsel %vm1691, %v1693, %v1689
    %v1695 = vmul.f32 1.0, %v1694
    %v1696 = vrcp.pop %v1580
    %v1697 = vmul.f32 %v1580, %v1696
    %v1698 = vsub.f32 1.0, %v1697
    %v1699 = vmul.f32 %v1696, %v1698
    %v1700 = vadd.f32 %v1696, %v1699
    %vm1701 = vweird.f32 %v1580
    %vm1702 = vweird.f32 %v1696
    %vm1703 = vmor %vm1701, %vm1702
    %v1704 = vsel %vm1703, %v1696, %v1700
    %v1705 = vand.u32 2147483647, %v1580
    %vm1706 = vcmp.eq.f32.partialorder %v1705, 8.507059e+37
    %v1707 = vand.u32 %v1580, 2147483648
    %v1708 = vor.u32 1.1754944e-38, %v1707
    %v1709 = vsel %vm1706, %v1708, %v1704
    %v1710 = vmul.f32 1.0, %v1709
    %v1711 = vrcp.pop %v1581
    %v1712 = vmul.f32 %v1581, %v1711
    %v1713 = vsub.f32 1.0, %v1712
    %v1714 = vmul.f32 %v1711, %v1713
    %v1715 = vadd.f32 %v1711, %v1714
    %vm1716 = vweird.f32 %v1581
    %vm1717 = vweird.f32 %v1711
    %vm1718 = vmor %vm1716, %vm1717
    %v1719 = vsel %vm1718, %v1711, %v1715
    %v1720 = vand.u32 2147483647, %v1581
    %vm1721 = vcmp.eq.f32.partialorder %v1720, 8.507059e+37
    %v1722 = vand.u32 %v1581, 2147483648
    %v1723 = vor.u32 1.1754944e-38, %v1722
    %v1724 = vsel %vm1721, %v1723, %v1719
    %v1725 = vmul.f32 1.0, %v1724
    %v1726 = vrcp.pop %v1582
    %v1727 = vmul.f32 %v1582, %v1726
    %v1728 = vsub.f32 1.0, %v1727
    %v1729 = vmul.f32 %v1726, %v1728
    %v1730 = vadd.f32 %v1726, %v1729
    %vm1731 = vweird.f32 %v1582
    %vm1732 = vweird.f32 %v1726
    %vm1733 = vmor %vm1731, %vm1732
    %v1734 = vsel %vm1733, %v1726, %v1730
    %v1735 = vand.u32 2147483647, %v1582
    %vm1736 = vcmp.eq.f32.partialorder %v1735, 8.507059e+37
    %v1737 = vand.u32 %v1582, 2147483648
    %v1738 = vor.u32 1.1754944e-38, %v1737
    %v1739 = vsel %vm1736, %v1738, %v1734
    %v1740 = vmul.f32 1.0, %v1739
    %v1741 = vrcp.pop %v1583
    %v1742 = vmul.f32 %v1583, %v1741
    %v1743 = vsub.f32 1.0, %v1742
    %v1744 = vmul.f32 %v1741, %v1743
    %v1745 = vadd.f32 %v1741, %v1744
    %vm1746 = vweird.f32 %v1583
    %vm1747 = vweird.f32 %v1741
    %vm1748 = vmor %vm1746, %vm1747
    %v1749 = vsel %vm1748, %v1741, %v1745
    %v1750 = vand.u32 2147483647, %v1583
    %vm1751 = vcmp.eq.f32.partialorder %v1750, 8.507059e+37
    %v1752 = vand.u32 %v1583, 2147483648
    %v1753 = vor.u32 1.1754944e-38, %v1752
    %v1754 = vsel %vm1751, %v1753, %v1749
    %v1755 = vmul.f32 1.0, %v1754
    %v1756 = vrcp.pop %v1584
    %v1757 = vmul.f32 %v1584, %v1756
    %v1758 = vsub.f32 1.0, %v1757
    %v1759 = vmul.f32 %v1756, %v1758
    %v1760 = vadd.f32 %v1756, %v1759
    %vm1761 = vweird.f32 %v1584
    %vm1762 = vweird.f32 %v1756
    %vm1763 = vmor %vm1761, %vm1762
    %v1764 = vsel %vm1763, %v1756, %v1760
    %v1765 = vand.u32 2147483647, %v1584
    %vm1766 = vcmp.eq.f32.partialorder %v1765, 8.507059e+37
    %v1767 = vand.u32 %v1584, 2147483648
    %v1768 = vor.u32 1.1754944e-38, %v1767
    %v1769 = vsel %vm1766, %v1768, %v1764
    %v1770 = vmul.f32 1.0, %v1769
    %v1771 = vrcp.pop %v1585
    %v1772 = vmul.f32 %v1585, %v1771
    %v1773 = vsub.f32 1.0, %v1772
    %v1774 = vmul.f32 %v1771, %v1773
    %v1775 = vadd.f32 %v1771, %v1774
    %vm1776 = vweird.f32 %v1585
    %vm1777 = vweird.f32 %v1771
    %vm1778 = vmor %vm1776, %vm1777
    %v1779 = vsel %vm1778, %v1771, %v1775
    %v1780 = vand.u32 2147483647, %v1585
    %vm1781 = vcmp.eq.f32.partialorder %v1780, 8.507059e+37
    %v1782 = vand.u32 %v1585, 2147483648
    %v1783 = vor.u32 1.1754944e-38, %v1782
    %v1784 = vsel %vm1781, %v1783, %v1779
    %v1785 = vmul.f32 1.0, %v1784
    %v1786 = vrcp.pop %v1586
    %v1787 = vmul.f32 %v1586, %v1786
    %v1788 = vsub.f32 1.0, %v1787
    %v1789 = vmul.f32 %v1786, %v1788
    %v1790 = vadd.f32 %v1786, %v1789
    %vm1791 = vweird.f32 %v1586
    %vm1792 = vweird.f32 %v1786
    %vm1793 = vmor %vm1791, %vm1792
    %v1794 = vsel %vm1793, %v1786, %v1790
    %v1795 = vand.u32 2147483647, %v1586
    %vm1796 = vcmp.eq.f32.partialorder %v1795, 8.507059e+37
    %v1797 = vand.u32 %v1586, 2147483648
    %v1798 = vor.u32 1.1754944e-38, %v1797
    %v1799 = vsel %vm1796, %v1798, %v1794
    %v1800 = vmul.f32 1.0, %v1799
    %v1801 = vrcp.pop %v1587
    %v1802 = vmul.f32 %v1587, %v1801
    %v1803 = vsub.f32 1.0, %v1802
    %v1804 = vmul.f32 %v1801, %v1803
    %v1805 = vadd.f32 %v1801, %v1804
    %vm1806 = vweird.f32 %v1587
    %vm1807 = vweird.f32 %v1801
    %vm1808 = vmor %vm1806, %vm1807
    %v1809 = vsel %vm1808, %v1801, %v1805
    %v1810 = vand.u32 2147483647, %v1587
    %vm1811 = vcmp.eq.f32.partialorder %v1810, 8.507059e+37
    %v1812 = vand.u32 %v1587, 2147483648
    %v1813 = vor.u32 1.1754944e-38, %v1812
    %v1814 = vsel %vm1811, %v1813, %v1809
    %v1815 = vmul.f32 1.0, %v1814
    %v1816 = vrcp.pop %v1588
    %v1817 = vmul.f32 %v1588, %v1816
    %v1818 = vsub.f32 1.0, %v1817
    %v1819 = vmul.f32 %v1816, %v1818
    %v1820 = vadd.f32 %v1816, %v1819
    %vm1821 = vweird.f32 %v1588
    %vm1822 = vweird.f32 %v1816
    %vm1823 = vmor %vm1821, %vm1822
    %v1824 = vsel %vm1823, %v1816, %v1820
    %v1825 = vand.u32 2147483647, %v1588
    %vm1826 = vcmp.eq.f32.partialorder %v1825, 8.507059e+37
    %v1827 = vand.u32 %v1588, 2147483648
    %v1828 = vor.u32 1.1754944e-38, %v1827
    %v1829 = vsel %vm1826, %v1828, %v1824
    %v1830 = vmul.f32 1.0, %v1829
    %v1831 = vrcp.pop %v1589
    %v1832 = vmul.f32 %v1589, %v1831
    %v1833 = vsub.f32 1.0, %v1832
    %v1834 = vmul.f32 %v1831, %v1833
    %v1835 = vadd.f32 %v1831, %v1834
    %vm1836 = vweird.f32 %v1589
    %vm1837 = vweird.f32 %v1831
    %vm1838 = vmor %vm1836, %vm1837
    %v1839 = vsel %vm1838, %v1831, %v1835
    %v1840 = vand.u32 2147483647, %v1589
    %vm1841 = vcmp.eq.f32.partialorder %v1840, 8.507059e+37
    %v1842 = vand.u32 %v1589, 2147483648
    %v1843 = vor.u32 1.1754944e-38, %v1842
    %v1844 = vsel %vm1841, %v1843, %v1839
    %v1845 = vmul.f32 1.0, %v1844
    %v1846 = vrcp.pop %v1590
    %v1847 = vmul.f32 %v1590, %v1846
    %v1848 = vsub.f32 1.0, %v1847
    %v1849 = vmul.f32 %v1846, %v1848
    %v1850 = vadd.f32 %v1846, %v1849
    %vm1851 = vweird.f32 %v1590
    %vm1852 = vweird.f32 %v1846
    %vm1853 = vmor %vm1851, %vm1852
    %v1854 = vsel %vm1853, %v1846, %v1850
    %v1855 = vand.u32 2147483647, %v1590
    %vm1856 = vcmp.eq.f32.partialorder %v1855, 8.507059e+37
    %v1857 = vand.u32 %v1590, 2147483648
    %v1858 = vor.u32 1.1754944e-38, %v1857
    %v1859 = vsel %vm1856, %v1858, %v1854
    %v1860 = vmul.f32 1.0, %v1859
    %v1861 = vrcp.pop %v1591
    %v1862 = vmul.f32 %v1591, %v1861
    %v1863 = vsub.f32 1.0, %v1862
    %v1864 = vmul.f32 %v1861, %v1863
    %v1865 = vadd.f32 %v1861, %v1864
    %vm1866 = vweird.f32 %v1591
    %vm1867 = vweird.f32 %v1861
    %vm1868 = vmor %vm1866, %vm1867
    %v1869 = vsel %vm1868, %v1861, %v1865
    %v1870 = vand.u32 2147483647, %v1591
    %vm1871 = vcmp.eq.f32.partialorder %v1870, 8.507059e+37
    %v1872 = vand.u32 %v1591, 2147483648
    %v1873 = vor.u32 1.1754944e-38, %v1872
    %v1874 = vsel %vm1871, %v1873, %v1869
    %v1875 = vmul.f32 1.0, %v1874
    %v1876 = vrcp.pop %v1592
    %v1877 = vmul.f32 %v1592, %v1876
    %v1878 = vsub.f32 1.0, %v1877
    %v1879 = vmul.f32 %v1876, %v1878
    %v1880 = vadd.f32 %v1876, %v1879
    %vm1881 = vweird.f32 %v1592
    %vm1882 = vweird.f32 %v1876
    %vm1883 = vmor %vm1881, %vm1882
    %v1884 = vsel %vm1883, %v1876, %v1880
    %v1885 = vand.u32 2147483647, %v1592
    %vm1886 = vcmp.eq.f32.partialorder %v1885, 8.507059e+37
    %v1887 = vand.u32 %v1592, 2147483648
    %v1888 = vor.u32 1.1754944e-38, %v1887
    %v1889 = vsel %vm1886, %v1888, %v1884
    %v1890 = vmul.f32 1.0, %v1889
    %v1891 = vrcp.pop %v1593
    %v1892 = vmul.f32 %v1593, %v1891
    %v1893 = vsub.f32 1.0, %v1892
    %v1894 = vmul.f32 %v1891, %v1893
    %v1895 = vadd.f32 %v1891, %v1894
    %vm1896 = vweird.f32 %v1593
    %vm1897 = vweird.f32 %v1891
    %vm1898 = vmor %vm1896, %vm1897
    %v1899 = vsel %vm1898, %v1891, %v1895
    %v1900 = vand.u32 2147483647, %v1593
    %vm1901 = vcmp.eq.f32.partialorder %v1900, 8.507059e+37
    %v1902 = vand.u32 %v1593, 2147483648
    %v1903 = vor.u32 1.1754944e-38, %v1902
    %v1904 = vsel %vm1901, %v1903, %v1899
    %v1905 = vmul.f32 1.0, %v1904
    %v1906 = vrcp.pop %v1594
    %v1907 = vmul.f32 %v1594, %v1906
    %v1908 = vsub.f32 1.0, %v1907
    %v1909 = vmul.f32 %v1906, %v1908
    %v1910 = vadd.f32 %v1906, %v1909
    %vm1911 = vweird.f32 %v1594
    %vm1912 = vweird.f32 %v1906
    %vm1913 = vmor %vm1911, %vm1912
    %v1914 = vsel %vm1913, %v1906, %v1910
    %v1915 = vand.u32 2147483647, %v1594
    %vm1916 = vcmp.eq.f32.partialorder %v1915, 8.507059e+37
    %v1917 = vand.u32 %v1594, 2147483648
    %v1918 = vor.u32 1.1754944e-38, %v1917
    %v1919 = vsel %vm1916, %v1918, %v1914
    %v1920 = vmul.f32 1.0, %v1919
    %v1921 = vrcp.pop %v1595
    %v1922 = vmul.f32 %v1595, %v1921
    %v1923 = vsub.f32 1.0, %v1922
    %v1924 = vmul.f32 %v1921, %v1923
    %v1925 = vadd.f32 %v1921, %v1924
    %vm1926 = vweird.f32 %v1595
    %vm1927 = vweird.f32 %v1921
    %vm1928 = vmor %vm1926, %vm1927
    %v1929 = vsel %vm1928, %v1921, %v1925
    %v1930 = vand.u32 2147483647, %v1595
    %vm1931 = vcmp.eq.f32.partialorder %v1930, 8.507059e+37
    %v1932 = vand.u32 %v1595, 2147483648
    %v1933 = vor.u32 1.1754944e-38, %v1932
    %v1934 = vsel %vm1931, %v1933, %v1929
    %v1935 = vmul.f32 1.0, %v1934
    %v1936 = vrcp.pop %v1596
    %v1937 = vmul.f32 %v1596, %v1936
    %v1938 = vsub.f32 1.0, %v1937
    %v1939 = vmul.f32 %v1936, %v1938
    %v1940 = vadd.f32 %v1936, %v1939
    %vm1941 = vweird.f32 %v1596
    %vm1942 = vweird.f32 %v1936
    %vm1943 = vmor %vm1941, %vm1942
    %v1944 = vsel %vm1943, %v1936, %v1940
    %v1945 = vand.u32 2147483647, %v1596
    %vm1946 = vcmp.eq.f32.partialorder %v1945, 8.507059e+37
    %v1947 = vand.u32 %v1596, 2147483648
    %v1948 = vor.u32 1.1754944e-38, %v1947
    %v1949 = vsel %vm1946, %v1948, %v1944
    %v1950 = vmul.f32 1.0, %v1949
    %v1951 = vrcp.pop %v1597
    %v1952 = vmul.f32 %v1597, %v1951
    %v1953 = vsub.f32 1.0, %v1952
    %v1954 = vmul.f32 %v1951, %v1953
    %v1955 = vadd.f32 %v1951, %v1954
    %vm1956 = vweird.f32 %v1597
    %vm1957 = vweird.f32 %v1951
    %vm1958 = vmor %vm1956, %vm1957
    %v1959 = vsel %vm1958, %v1951, %v1955
    %v1960 = vand.u32 2147483647, %v1597
    %vm1961 = vcmp.eq.f32.partialorder %v1960, 8.507059e+37
    %v1962 = vand.u32 %v1597, 2147483648
    %v1963 = vor.u32 1.1754944e-38, %v1962
    %v1964 = vsel %vm1961, %v1963, %v1959
    %v1965 = vmul.f32 1.0, %v1964
    %v1966 = vrcp.pop %v1598
    %v1967 = vmul.f32 %v1598, %v1966
    %v1968 = vsub.f32 1.0, %v1967
    %v1969 = vmul.f32 %v1966, %v1968
    %v1970 = vadd.f32 %v1966, %v1969
    %vm1971 = vweird.f32 %v1598
    %vm1972 = vweird.f32 %v1966
    %vm1973 = vmor %vm1971, %vm1972
    %v1974 = vsel %vm1973, %v1966, %v1970
    %v1975 = vand.u32 2147483647, %v1598
    %vm1976 = vcmp.eq.f32.partialorder %v1975, 8.507059e+37
    %v1977 = vand.u32 %v1598, 2147483648
    %v1978 = vor.u32 1.1754944e-38, %v1977
    %v1979 = vsel %vm1976, %v1978, %v1974
    %v1980 = vmul.f32 1.0, %v1979
    %v1981 = vrcp.pop %v1599
    %v1982 = vmul.f32 %v1599, %v1981
    %v1983 = vsub.f32 1.0, %v1982
    %v1984 = vmul.f32 %v1981, %v1983
    %v1985 = vadd.f32 %v1981, %v1984
    %vm1986 = vweird.f32 %v1599
    %vm1987 = vweird.f32 %v1981
    %vm1988 = vmor %vm1986, %vm1987
    %v1989 = vsel %vm1988, %v1981, %v1985
    %v1990 = vand.u32 2147483647, %v1599
    %vm1991 = vcmp.eq.f32.partialorder %v1990, 8.507059e+37
    %v1992 = vand.u32 %v1599, 2147483648
    %v1993 = vor.u32 1.1754944e-38, %v1992
    %v1994 = vsel %vm1991, %v1993, %v1989
    %v1995 = vmul.f32 1.0, %v1994
    %v1996 = vrcp.pop %v1600
    %v1997 = vmul.f32 %v1600, %v1996
    %v1998 = vsub.f32 1.0, %v1997
    %v1999 = vmul.f32 %v1996, %v1998
    %v2000 = vadd.f32 %v1996, %v1999
    %vm2001 = vweird.f32 %v1600
    %vm2002 = vweird.f32 %v1996
    %vm2003 = vmor %vm2001, %vm2002
    %v2004 = vsel %vm2003, %v1996, %v2000
    %v2005 = vand.u32 2147483647, %v1600
    %vm2006 = vcmp.eq.f32.partialorder %v2005, 8.507059e+37
    %v2007 = vand.u32 %v1600, 2147483648
    %v2008 = vor.u32 1.1754944e-38, %v2007
    %v2009 = vsel %vm2006, %v2008, %v2004
    %v2010 = vmul.f32 1.0, %v2009
    %v2011 = vrcp.pop %v1601
    %v2012 = vmul.f32 %v1601, %v2011
    %v2013 = vsub.f32 1.0, %v2012
    %v2014 = vmul.f32 %v2011, %v2013
    %v2015 = vadd.f32 %v2011, %v2014
    %vm2016 = vweird.f32 %v1601
    %vm2017 = vweird.f32 %v2011
    %vm2018 = vmor %vm2016, %vm2017
    %v2019 = vsel %vm2018, %v2011, %v2015
    %v2020 = vand.u32 2147483647, %v1601
    %vm2021 = vcmp.eq.f32.partialorder %v2020, 8.507059e+37
    %v2022 = vand.u32 %v1601, 2147483648
    %v2023 = vor.u32 1.1754944e-38, %v2022
    %v2024 = vsel %vm2021, %v2023, %v2019
    %v2025 = vmul.f32 1.0, %v2024
    %v2026 = vrcp.pop %v1602
    %v2027 = vmul.f32 %v1602, %v2026
    %v2028 = vsub.f32 1.0, %v2027
    %v2029 = vmul.f32 %v2026, %v2028
    %v2030 = vadd.f32 %v2026, %v2029
    %vm2031 = vweird.f32 %v1602
    %vm2032 = vweird.f32 %v2026
    %vm2033 = vmor %vm2031, %vm2032
    %v2034 = vsel %vm2033, %v2026, %v2030
    %v2035 = vand.u32 2147483647, %v1602
    %vm2036 = vcmp.eq.f32.partialorder %v2035, 8.507059e+37
    %v2037 = vand.u32 %v1602, 2147483648
    %v2038 = vor.u32 1.1754944e-38, %v2037
    %v2039 = vsel %vm2036, %v2038, %v2034
    %v2040 = vmul.f32 1.0, %v2039
    %v2041 = vrcp.pop %v1603
    %v2042 = vmul.f32 %v1603, %v2041
    %v2043 = vsub.f32 1.0, %v2042
    %v2044 = vmul.f32 %v2041, %v2043
    %v2045 = vadd.f32 %v2041, %v2044
    %vm2046 = vweird.f32 %v1603
    %vm2047 = vweird.f32 %v2041
    %vm2048 = vmor %vm2046, %vm2047
    %v2049 = vsel %vm2048, %v2041, %v2045
    %v2050 = vand.u32 2147483647, %v1603
    %vm2051 = vcmp.eq.f32.partialorder %v2050, 8.507059e+37
    %v2052 = vand.u32 %v1603, 2147483648
    %v2053 = vor.u32 1.1754944e-38, %v2052
    %v2054 = vsel %vm2051, %v2053, %v2049
    %v2055 = vmul.f32 1.0, %v2054
    %v2056 = vrcp.pop %v1604
    %v2057 = vmul.f32 %v1604, %v2056
    %v2058 = vsub.f32 1.0, %v2057
    %v2059 = vmul.f32 %v2056, %v2058
    %v2060 = vadd.f32 %v2056, %v2059
    %vm2061 = vweird.f32 %v1604
    %vm2062 = vweird.f32 %v2056
    %vm2063 = vmor %vm2061, %vm2062
    %v2064 = vsel %vm2063, %v2056, %v2060
    %v2065 = vand.u32 2147483647, %v1604
    %vm2066 = vcmp.eq.f32.partialorder %v2065, 8.507059e+37
    %v2067 = vand.u32 %v1604, 2147483648
    %v2068 = vor.u32 1.1754944e-38, %v2067
    %v2069 = vsel %vm2066, %v2068, %v2064
    %v2070 = vmul.f32 1.0, %v2069
    %v2071 = vrcp.pop %v1605
    %v2072 = vmul.f32 %v1605, %v2071
    %v2073 = vsub.f32 1.0, %v2072
    %v2074 = vmul.f32 %v2071, %v2073
    %v2075 = vadd.f32 %v2071, %v2074
    %vm2076 = vweird.f32 %v1605
    %vm2077 = vweird.f32 %v2071
    %vm2078 = vmor %vm2076, %vm2077
    %v2079 = vsel %vm2078, %v2071, %v2075
    %v2080 = vand.u32 2147483647, %v1605
    %vm2081 = vcmp.eq.f32.partialorder %v2080, 8.507059e+37
    %v2082 = vand.u32 %v1605, 2147483648
    %v2083 = vor.u32 1.1754944e-38, %v2082
    %v2084 = vsel %vm2081, %v2083, %v2079
    %v2085 = vmul.f32 1.0, %v2084
    %vm2086 = vcmp.ge.f32.partialorder %v1367, 0.0
    %vm2087 = vcmp.ge.f32.partialorder %v1369, 0.0
    %vm2088 = vcmp.ge.f32.partialorder %v1372, 0.0
    %vm2089 = vcmp.ge.f32.partialorder %v1374, 0.0
    %vm2090 = vcmp.ge.f32.partialorder %v1377, 0.0
    %vm2091 = vcmp.ge.f32.partialorder %v1379, 0.0
    %vm2092 = vcmp.ge.f32.partialorder %v1382, 0.0
    %vm2093 = vcmp.ge.f32.partialorder %v1384, 0.0
    %vm2094 = vcmp.ge.f32.partialorder %v1387, 0.0
    %vm2095 = vcmp.ge.f32.partialorder %v1389, 0.0
    %vm2096 = vcmp.ge.f32.partialorder %v1392, 0.0
    %vm2097 = vcmp.ge.f32.partialorder %v1394, 0.0
    %vm2098 = vcmp.ge.f32.partialorder %v1397, 0.0
    %vm2099 = vcmp.ge.f32.partialorder %v1399, 0.0
    %vm2100 = vcmp.ge.f32.partialorder %v1402, 0.0
    %vm2101 = vcmp.ge.f32.partialorder %v1404, 0.0
    %vm2102 = vcmp.ge.f32.partialorder %v1407, 0.0
    %vm2103 = vcmp.ge.f32.partialorder %v1409, 0.0
    %vm2104 = vcmp.ge.f32.partialorder %v1412, 0.0
    %vm2105 = vcmp.ge.f32.partialorder %v1414, 0.0
    %vm2106 = vcmp.ge.f32.partialorder %v1417, 0.0
    %vm2107 = vcmp.ge.f32.partialorder %v1419, 0.0
    %vm2108 = vcmp.ge.f32.partialorder %v1422, 0.0
    %vm2109 = vcmp.ge.f32.partialorder %v1424, 0.0
    %vm2110 = vcmp.ge.f32.partialorder %v1427, 0.0
    %vm2111 = vcmp.ge.f32.partialorder %v1429, 0.0
    %vm2112 = vcmp.ge.f32.partialorder %v1432, 0.0
    %vm2113 = vcmp.ge.f32.partialorder %v1434, 0.0
    %vm2114 = vcmp.ge.f32.partialorder %v1437, 0.0
    %vm2115 = vcmp.ge.f32.partialorder %v1439, 0.0
    %vm2116 = vcmp.ge.f32.partialorder %v1442, 0.0
    %vm2117 = vcmp.ge.f32.partialorder %v1444, 0.0
    %v2118 = vmul.f32 %v1511, %v1620
    %v2119 = vmul.f32 %v1513, %v1635
    %v2120 = vmul.f32 %v1515, %v1650
    %v2121 = vmul.f32 %v1517, %v1665
    %v2122 = vmul.f32 %v1519, %v1680
    %v2123 = vmul.f32 %v1521, %v1695
    %v2124 = vmul.f32 %v1523, %v1710
    %v2125 = vmul.f32 %v1525, %v1725
    %v2126 = vmul.f32 %v1527, %v1740
    %v2127 = vmul.f32 %v1529, %v1755
    %v2128 = vmul.f32 %v1531, %v1770
    %v2129 = vmul.f32 %v1533, %v1785
    %v2130 = vmul.f32 %v1535, %v1800
    %v2131 = vmul.f32 %v1537, %v1815
    %v2132 = vmul.f32 %v1539, %v1830
    %v2133 = vmul.f32 %v1541, %v1845
    %v2134 = vmul.f32 %v1543, %v1860
    %v2135 = vmul.f32 %v1545, %v1875
    %v2136 = vmul.f32 %v1547, %v1890
    %v2137 = vmul.f32 %v1549, %v1905
    %v2138 = vmul.f32 %v1551, %v1920
    %v2139 = vmul.f32 %v1553, %v1935
    %v2140 = vmul.f32 %v1555, %v1950
    %v2141 = vmul.f32 %v1557, %v1965
    %v2142 = vmul.f32 %v1559, %v1980
    %v2143 = vmul.f32 %v1561, %v1995
    %v2144 = vmul.f32 %v1563, %v2010
    %v2145 = vmul.f32 %v1565, %v2025
    %v2146 = vmul.f32 %v1567, %v2040
    %v2147 = vmul.f32 %v1569, %v2055
    %v2148 = vmul.f32 %v1571, %v2070
    %v2149 = vmul.f32 %v1573, %v2085
    %v2150 = vsel %vm2086, %v1620, %v2118
    %v2151 = vsel %vm2087, %v1635, %v2119
    %v2152 = vsel %vm2088, %v1650, %v2120
    %v2153 = vsel %vm2089, %v1665, %v2121
    %v2154 = vsel %vm2090, %v1680, %v2122
    %v2155 = vsel %vm2091, %v1695, %v2123
    %v2156 = vsel %vm2092, %v1710, %v2124
    %v2157 = vsel %vm2093, %v1725, %v2125
    %v2158 = vsel %vm2094, %v1740, %v2126
    %v2159 = vsel %vm2095, %v1755, %v2127
    %v2160 = vsel %vm2096, %v1770, %v2128
    %v2161 = vsel %vm2097, %v1785, %v2129
    %v2162 = vsel %vm2098, %v1800, %v2130
    %v2163 = vsel %vm2099, %v1815, %v2131
    %v2164 = vsel %vm2100, %v1830, %v2132
    %v2165 = vsel %vm2101, %v1845, %v2133
    %v2166 = vsel %vm2102, %v1860, %v2134
    %v2167 = vsel %vm2103, %v1875, %v2135
    %v2168 = vsel %vm2104, %v1890, %v2136
    %v2169 = vsel %vm2105, %v1905, %v2137
    %v2170 = vsel %vm2106, %v1920, %v2138
    %v2171 = vsel %vm2107, %v1935, %v2139
    %v2172 = vsel %vm2108, %v1950, %v2140
    %v2173 = vsel %vm2109, %v1965, %v2141
    %v2174 = vsel %vm2110, %v1980, %v2142
    %v2175 = vsel %vm2111, %v1995, %v2143
    %v2176 = vsel %vm2112, %v2010, %v2144
    %v2177 = vsel %vm2113, %v2025, %v2145
    %v2178 = vsel %vm2114, %v2040, %v2146
    %v2179 = vsel %vm2115, %v2055, %v2147
    %v2180 = vsel %vm2116, %v2070, %v2148
    %v2181 = vsel %vm2117, %v2085, %v2149
    %2182 = vst [vmem:[#allocation16] sm:$0xff] %v2150
    %2183 = vst [vmem:[#allocation16 + $0x8] sm:$0xff] %v2151
    %2184 = vst [vmem:[#allocation16 + $0x10] sm:$0xff] %v2152
    %2185 = vst [vmem:[#allocation16 + $0x18] sm:$0xff] %v2153
    %2186 = vst [vmem:[#allocation16 + $0x20] sm:$0xff] %v2154
    %2187 = vst [vmem:[#allocation16 + $0x28] sm:$0xff] %v2155
    %2188 = vst [vmem:[#allocation16 + $0x30] sm:$0xff] %v2156
    %2189 = vst [vmem:[#allocation16 + $0x38] sm:$0xff] %v2157
    %2190 = vst [vmem:[#allocation16 + $0x40] sm:$0xff] %v2158
    %2191 = vst [vmem:[#allocation16 + $0x48] sm:$0xff] %v2159
    %2192 = vst [vmem:[#allocation16 + $0x50] sm:$0xff] %v2160
    %2193 = vst [vmem:[#allocation16 + $0x58] sm:$0xff] %v2161
    %2194 = vst [vmem:[#allocation16 + $0x60] sm:$0xff] %v2162
    %2195 = vst [vmem:[#allocation16 + $0x68] sm:$0xff] %v2163
    %2196 = vst [vmem:[#allocation16 + $0x70] sm:$0xff] %v2164
    %2197 = vst [vmem:[#allocation16 + $0x78] sm:$0xff] %v2165
    %2198 = vst [vmem:[#allocation16 + $0x80] sm:$0xff] %v2166
    %2199 = vst [vmem:[#allocation16 + $0x88] sm:$0xff] %v2167
    %2200 = vst [vmem:[#allocation16 + $0x90] sm:$0xff] %v2168
    %2201 = vst [vmem:[#allocation16 + $0x98] sm:$0xff] %v2169
    %2202 = vst [vmem:[#allocation16 + $0xa0] sm:$0xff] %v2170
    %2203 = vst [vmem:[#allocation16 + $0xa8] sm:$0xff] %v2171
    %2204 = vst [vmem:[#allocation16 + $0xb0] sm:$0xff] %v2172
    %2205 = vst [vmem:[#allocation16 + $0xb8] sm:$0xff] %v2173
    %2206 = vst [vmem:[#allocation16 + $0xc0] sm:$0xff] %v2174
    %2207 = vst [vmem:[#allocation16 + $0xc8] sm:$0xff] %v2175
    %2208 = vst [vmem:[#allocation16 + $0xd0] sm:$0xff] %v2176
    %2209 = vst [vmem:[#allocation16 + $0xd8] sm:$0xff] %v2177
    %2210 = vst [vmem:[#allocation16 + $0xe0] sm:$0xff] %v2178
    %2211 = vst [vmem:[#allocation16 + $0xe8] sm:$0xff] %v2179
    %2212 = vst [vmem:[#allocation16 + $0xf0] sm:$0xff] %v2180
    %2213 = vst [vmem:[#allocation16 + $0xf8] sm:$0xff] %v2181
    // Predicated region
    $region66: #{tpu_custom_call.1} parent=1 // pred_check
      _
    $region67: #{tpu_custom_call.1} parent=1 // pred_check_branch
      %2215 = sbr.rel (0) target = $region69
    $region68: #{tpu_custom_call.1} parent=1 // pred_region
      %2217 = vsyncadd [#allocation4], 0
      %s2218 = sshll.u32 [#allocation16], 4
      %s2219 = int_to_ptr.vmem [resolvable:$true] %s2218
      %s2220 = sshll.u32 %s8, 4
      %s2221 = int_to_ptr.hbm [resolvable:$true] %s2220
      %2226 = dma.vmem_to_hbm [thread:$0]  %s2219, 4096, %s2221, [#allocation4], 128, 128, 8
    $region69: #{tpu_custom_call.1} parent=1 // pred_fallthru
      _
    // Predicated region
    $region70: #{tpu_custom_call.1} parent=1 // pred_check
      _
    $region71: #{tpu_custom_call.1} parent=1 // pred_check_branch
      %2228 = sbr.rel (0) target = $region73
    $region72: #{tpu_custom_call.1} parent=1 // pred_region
      %2230 = dma.done [#allocation4], 4096
    $region73: #{tpu_custom_call.1} parent=1 // pred_fallthru
      _
    %2231 = vsyncpa [#allocation3], 1
    %2232 = vsyncpa [#allocation6], 1
    %2233 = vsyncpa [#allocation9], 1
    %2234 = vsyncpa [#allocation12], 1
    %2235 = vsyncpa [#allocation15], 1
    %2236 = vsyncpa [#allocation4], 1

</llo_original>
